<compile_context>
chip_gen: v6e
topology: v6e:2x2x1
jax: 0.10.0
libtpu: 0.0.40
codegen_flags: <defaults>
</compile_context>

<pallas_src>
import math

import numpy as np
import jax
import jax.numpy as jnp
from jax.experimental import pallas as pl
from jax.experimental.pallas import tpu as pltpu


def _round_up(v, m):
    return (v + m - 1) // m * m


def _pick_row_tile(H, W, target_pixels=512):
    """Largest divisor of H whose row tile covers <= ~target_pixels output pixels."""
    ht = max(1, min(H, target_pixels // max(W, 1)))
    while H % ht:
        ht -= 1
    # keep the flattened (HT*W) tile sublane-aligned unless it is the full image
    if ht < H and (ht * W) % 8 != 0:
        ht = H
    return ht


def synthesis_layer_forward(x, w, params, *, resolution, kernel_size=3, up=1,
                            noise_mode='const', gain=1.0, row_tile=None):
    """Pallas implementation of SynthesisLayer.forward (fused_modconv path)."""
    assert up == 1  # TODO(synk): up=2 transposed-conv + upfirdn2d resample-filter path not implemented
    assert noise_mode in ('const', 'none')  # TODO(synk): 'random' noise (torch.randn) not implemented
    assert kernel_size % 2 == 1

    B, Cin, H, W = x.shape
    assert H == resolution // up and W == resolution // up
    w_dim = w.shape[1]
    weight = params['weight']                      # [Cout, Cin, K, K]
    Cout = weight.shape[0]
    K = kernel_size
    K2 = K * K
    pad = K // 2
    Wp = W + 2 * pad
    HW = H * W

    # lane-dense output / weight columns (pad Cout up to a multiple of 128)
    Cout_p = _round_up(Cout, 128)
    pad_cout = Cout_p - Cout

    # row tiling of the output image
    if row_tile is None:
        HT = _pick_row_tile(H, W)
    else:
        HT = int(row_tile)
        assert H % HT == 0
        assert HT == H or (HT * W) % 8 == 0
    n_tiles = H // HT

    weight_gain = 1.0 / math.sqrt(w_dim)           # FullyConnectedLayer weight_gain (lr_mult=1)
    act_gain = math.sqrt(2.0) * gain               # lrelu def_gain * gain

    # ---- host-side staging (cheap XLA glue: pad / transpose / cast only) ----
    aff_w = params['affine_w'].astype(jnp.float32)                       # [Cin, w_dim]
    aff_b_col = params['affine_b'].astype(jnp.float32).reshape(Cin, 1)   # [Cin, 1]
    wvec_col = w.astype(jnp.float32).reshape(B, w_dim, 1)                # [B, w_dim, 1]

    # conv weight tap-major: [K2, Cin, Cout_p] (tap = dy*K + dx), f32 for modulation
    weight_k = jnp.transpose(weight.astype(jnp.float32), (2, 3, 1, 0)).reshape(K2, Cin, Cout)
    if pad_cout:
        weight_k = jnp.pad(weight_k, ((0, 0), (0, 0), (0, pad_cout)))
    bias_row = params['bias'].astype(jnp.float32).reshape(1, Cout)
    if pad_cout:
        bias_row = jnp.pad(bias_row, ((0, 0), (0, pad_cout)))

    # input as bf16, channel-last, spatially padded, duplicated halo rows per tile
    # TODO(synk): the ~(2/HT) duplicated halo rows could be removed entirely with a
    #             manual double-buffered DMA (memory_space=pl.ANY) halo fetch.
    xp = jnp.pad(x.astype(jnp.float32), ((0, 0), (0, 0), (pad, pad), (pad, pad)))
    xp = jnp.transpose(xp, (0, 2, 3, 1)).astype(jnp.bfloat16)            # [B, H+2p, W+2p, Cin]
    wins = [xp[:, t * HT: t * HT + HT + 2 * pad, :, :] for t in range(n_tiles)]
    xwin = jnp.stack(wins, axis=1).reshape(B * n_tiles, HT + 2 * pad, Wp, Cin)

    if noise_mode == 'const':
        noise_col = (params['noise_const'] * params['noise_strength']).astype(jnp.float32).reshape(HW, 1)
    else:
        noise_col = jnp.zeros((HW, 1), jnp.float32)

    # ---- VMEM budget (blocks are double-buffered) ----
    xwin_blk = (HT + 2 * pad) * Wp * Cin * 2           # bf16
    out_blk = HT * W * Cout_p * 4
    w_blk = K2 * Cin * Cout_p * 4
    est = (2 * xwin_blk + 2 * out_blk + 2 * w_blk
           + K2 * Cin * Cout_p * (2 + 4)               # bf16 scratch + f32 temp at init
           + 2 * HT * W * 4                            # noise tile
           + out_blk                                   # f32 accumulator value
           + (Cin * w_dim + Cin + Cout_p + w_dim) * 4)
    vmem_limit = int(min(64 * 2 ** 20, max(32 * 2 ** 20, 2 * est)))

    def kernel(wvec_ref, affw_ref, affb_ref, weight_ref, x_ref, noise_ref,
               bias_ref, out_ref, wmod_sc):
        # ---- once per batch: affine styles -> modulate -> demodulate (f32) ----
        @pl.when(pl.program_id(1) == 0)
        def _():
            styles = (jnp.dot(affw_ref[...], wvec_ref[...],
                              preferred_element_type=jnp.float32) * weight_gain
                      + affb_ref[...])                                    # [Cin, 1]
            # VPU broadcast of styles over the k*k taps and Cout (no expand matmul)
            wmod = weight_ref[...] * styles[None, :, :]                   # [K2, Cin, Cout_p]
            ssq = jnp.sum(jnp.sum(wmod * wmod, axis=0), axis=0, keepdims=True)  # [1, Cout_p]
            d = jax.lax.rsqrt(ssq + 1e-8)
            wmod_sc[...] = (wmod * d[None, :, :]).astype(wmod_sc.dtype)   # bf16 for the MXU

        # ---- conv = K*K shifted-slice matmuls over the halo block (bf16 in, f32 acc) ----
        xb = x_ref[...]                                                   # [HT+2p, Wp, Cin] bf16
        acc = jnp.zeros((HT * W, Cout_p), jnp.float32)
        for dy in range(K):
            for dx in range(K):
                xt = xb[dy:dy + HT, dx:dx + W, :].reshape(HT * W, Cin)
                acc = acc + jnp.dot(xt, wmod_sc[dy * K + dx],
                                    preferred_element_type=jnp.float32)

        # ---- epilogue: const noise + bias + leaky-ReLU * gain ----
        y = acc + noise_ref[...]                                          # bcast over Cout
        y = y + bias_ref[...]                                             # bcast over rows
        y = jnp.where(y >= 0.0, y, 0.2 * y) * act_gain
        out_ref[...] = y.astype(out_ref.dtype)

    out = pl.pallas_call(
        kernel,
        out_shape=jax.ShapeDtypeStruct((B, HW, Cout_p), jnp.float32),
        grid_spec=pltpu.PrefetchScalarGridSpec(
            num_scalar_prefetch=0,
            grid=(B, n_tiles),
            in_specs=[
                pl.BlockSpec((None, w_dim, 1), lambda b, t: (b, 0, 0)),          # w vector (per batch)
                pl.BlockSpec((Cin, w_dim), lambda b, t: (0, 0)),                 # affine weight
                pl.BlockSpec((Cin, 1), lambda b, t: (0, 0)),                     # affine bias
                pl.BlockSpec((K2, Cin, Cout_p), lambda b, t: (0, 0, 0)),         # conv weight (tap-major)
                pl.BlockSpec((None, HT + 2 * pad, Wp, Cin),
                             lambda b, t: (b * n_tiles + t, 0, 0, 0)),           # halo'd input rows (bf16)
                pl.BlockSpec((HT * W, 1), lambda b, t: (t, 0)),                  # const noise rows
                pl.BlockSpec((1, Cout_p), lambda b, t: (0, 0)),                  # conv bias
            ],
            out_specs=pl.BlockSpec((None, HT * W, Cout_p), lambda b, t: (b, t, 0)),
            scratch_shapes=[pltpu.VMEM((K2, Cin, Cout_p), jnp.bfloat16)],        # per-batch modulated weight
        ),
        compiler_params=pltpu.CompilerParams(
            dimension_semantics=("parallel", "arbitrary"),
            vmem_limit_bytes=vmem_limit,
        ),
    )(wvec_col, aff_w, aff_b_col, weight_k, xwin, noise_col, bias_row)

    # strip Cout padding, back to NCHW
    out = out[:, :, :Cout].reshape(B, H, W, Cout).transpose(0, 3, 1, 2)
    return out


def reference_forward(x, w, params, *, gain=1.0, noise_mode='const'):
    """Pure-JAX f32 reference mirroring the PyTorch forward (fused_modconv path)."""
    w_dim = w.shape[1]
    weight = params['weight']
    styles = w @ (params['affine_w'] * (1.0 / math.sqrt(w_dim))).T + params['affine_b']
    wmod = weight[None] * styles[:, None, :, None, None]               # [B, Cout, Cin, k, k]
    d = jax.lax.rsqrt(jnp.sum(wmod ** 2, axis=(2, 3, 4)) + 1e-8)       # [B, Cout]
    wmod = wmod * d[:, :, None, None, None]
    pad = weight.shape[-1] // 2
    outs = []
    for b in range(x.shape[0]):
        outs.append(jax.lax.conv_general_dilated(
            x[b:b + 1], wmod[b], window_strides=(1, 1),
            padding=[(pad, pad), (pad, pad)],
            dimension_numbers=('NCHW', 'OIHW', 'NCHW')))
    y = jnp.concatenate(outs, axis=0)
    if noise_mode == 'const':
        y = y + params['noise_const'] * params['noise_strength']
    y = y + params['bias'][None, :, None, None]
    y = jnp.where(y >= 0.0, y, 0.2 * y) * (math.sqrt(2.0) * gain)
    return y


if __name__ == "__main__":
    B, Cin, Cout, w_dim, res, K = 2, 4, 8, 16, 16, 3

    key = jax.random.PRNGKey(0)
    k1, k2, k3, k4, k5 = jax.random.split(key, 5)
    params = dict(
        affine_w=jax.random.normal(k1, (Cin, w_dim), jnp.float32),     # torch.randn([in_ch, w_dim])
        affine_b=jnp.ones((Cin,), jnp.float32),                        # bias_init=1
        weight=jax.random.normal(k2, (Cout, Cin, K, K), jnp.float32),  # torch.randn([out,in,k,k])
        noise_const=jax.random.normal(k3, (res, res), jnp.float32),    # registered buffer
        noise_strength=jnp.float32(0.1),   # module inits 0; nonzero so the noise path is exercised
        bias=jnp.zeros((Cout,), jnp.float32),
    )
    x = jax.random.normal(k4, (B, Cin, res, res), jnp.float32)
    w = jax.random.normal(k5, (B, w_dim), jnp.float32)

    # row_tile=8 -> 2 row tiles per batch, exercising the per-batch wmod hoist + reuse path
    y = synthesis_layer_forward(x, w, params, resolution=res, kernel_size=K,
                                up=1, noise_mode='const', row_tile=8)
    y = jax.block_until_ready(y)

    y_ref = reference_forward(x, w, params, noise_mode='const')
    assert y.shape == (B, Cout, res, res)
    # bf16 MXU path vs f32 reference -> relaxed tolerance
    np.testing.assert_allclose(np.asarray(y), np.asarray(y_ref), rtol=5e-2, atol=5e-2)
    print("KERNEL_OK")
</pallas_src>

<mosaic_0001>
module attributes {stable_mosaic.version = 11 : i64} {
  func.func @kernel(%arg0: i32, %arg1: i32, %arg2: memref<1x16x1xf32, #tpu.memory_space<vmem>>, %arg3: memref<4x16xf32, #tpu.memory_space<vmem>>, %arg4: memref<4x1xf32, #tpu.memory_space<vmem>>, %arg5: memref<9x4x128xf32, #tpu.memory_space<vmem>>, %arg6: memref<1x10x18x4xbf16, #tpu.memory_space<vmem>>, %arg7: memref<128x1xf32, #tpu.memory_space<vmem>>, %arg8: memref<1x128xf32, #tpu.memory_space<vmem>>, %arg9: memref<1x128x128xf32, #tpu.memory_space<vmem>>, %arg10: memref<9x4x128xbf16, #tpu.memory_space<vmem>>) attributes {dimension_semantics = [#tpu.dimension_semantics<parallel>, #tpu.dimension_semantics<arbitrary>], iteration_bounds = array<i64: 2, 2>, scalar_prefetch = 0 : i64, scratch_operands = 1 : i64, tpu.core_type = #tpu.core_type<tc>, window_params = [{transform_indices = @transform_0, window_bounds = array<i64: 1, 16, 1>}, {pipeline_mode = #tpu.pipeline_mode<synchronous>, transform_indices = @transform_1, window_bounds = array<i64: 4, 16>}, {pipeline_mode = #tpu.pipeline_mode<synchronous>, transform_indices = @transform_2, window_bounds = array<i64: 4, 1>}, {pipeline_mode = #tpu.pipeline_mode<synchronous>, transform_indices = @transform_3, window_bounds = array<i64: 9, 4, 128>}, {transform_indices = @transform_4, window_bounds = array<i64: 1, 10, 18, 4>}, {transform_indices = @transform_5, window_bounds = array<i64: 128, 1>}, {pipeline_mode = #tpu.pipeline_mode<synchronous>, transform_indices = @transform_6, window_bounds = array<i64: 1, 128>}, {transform_indices = @transform_7, window_bounds = array<i64: 1, 128, 128>}]} {
    %c0_i32 = arith.constant 0 : i32
    %0 = arith.cmpi eq, %arg1, %c0_i32 : i32
    %1 = arith.extui %0 : i1 to i32
    %c0_i32_0 = arith.constant 0 : i32
    %2 = arith.cmpi ne, %1, %c0_i32_0 : i32
    scf.if %2 {
      %c0_42 = arith.constant 0 : index
      %c0_43 = arith.constant 0 : index
      %76 = vector.load %arg3[%c0_42, %c0_43] : memref<4x16xf32, #tpu.memory_space<vmem>>, vector<4x16xf32>
      %c0_44 = arith.constant 0 : index
      %c0_45 = arith.constant 0 : index
      %c0_46 = arith.constant 0 : index
      %77 = vector.load %arg2[%c0_44, %c0_45, %c0_46] : memref<1x16x1xf32, #tpu.memory_space<vmem>>, vector<1x16x1xf32>
      %78 = vector.shape_cast %77 : vector<1x16x1xf32> to vector<16x1xf32>
      %cst_47 = arith.constant dense<0.000000e+00> : vector<4x1xf32>
      %79 = tpu.matmul %76, %78, %cst_47 {dimension_numbers = #tpu.dot_dimension_numbers<[1], [0], [0], [1], [0, 0, 1, 1], [], []>} : vector<4x16xf32>, vector<16x1xf32>, vector<4x1xf32> -> vector<4x1xf32>
      %cst_48 = arith.constant 2.500000e-01 : f32
      %80 = vector.broadcast %cst_48 : f32 to vector<4x1xf32>
      %81 = arith.mulf %79, %80 : vector<4x1xf32>
      %c0_49 = arith.constant 0 : index
      %c0_50 = arith.constant 0 : index
      %82 = vector.load %arg4[%c0_49, %c0_50] : memref<4x1xf32, #tpu.memory_space<vmem>>, vector<4x1xf32>
      %83 = arith.addf %81, %82 : vector<4x1xf32>
      %c0_51 = arith.constant 0 : index
      %c0_52 = arith.constant 0 : index
      %c0_53 = arith.constant 0 : index
      %84 = vector.load %arg5[%c0_51, %c0_52, %c0_53] : memref<9x4x128xf32, #tpu.memory_space<vmem>>, vector<9x4x128xf32>
      %85 = vector.shape_cast %83 : vector<4x1xf32> to vector<1x4x1xf32>
      %86 = vector.broadcast %85 : vector<1x4x1xf32> to vector<9x4x128xf32>
      %87 = arith.mulf %84, %86 : vector<9x4x128xf32>
      %88 = arith.mulf %87, %87 : vector<9x4x128xf32>
      %cst_54 = arith.constant dense<0.000000e+00> : vector<4x128xf32>
      %89 = vector.multi_reduction <add>, %88, %cst_54 [0] : vector<9x4x128xf32> to vector<4x128xf32>
      %cst_55 = arith.constant dense<0.000000e+00> : vector<128xf32>
      %90 = vector.multi_reduction <add>, %89, %cst_55 [0] : vector<4x128xf32> to vector<128xf32>
      %91 = vector.shape_cast %90 : vector<128xf32> to vector<1x128xf32>
      %cst_56 = arith.constant 9.99999993E-9 : f32
      %92 = vector.broadcast %cst_56 : f32 to vector<1x128xf32>
      %93 = arith.addf %91, %92 : vector<1x128xf32>
      %94 = math.rsqrt %93 : vector<1x128xf32>
      %95 = vector.shape_cast %94 : vector<1x128xf32> to vector<1x1x128xf32>
      %96 = vector.broadcast %95 : vector<1x1x128xf32> to vector<9x4x128xf32>
      %97 = arith.mulf %87, %96 : vector<9x4x128xf32>
      %98 = arith.truncf %97 : vector<9x4x128xf32> to vector<9x4x128xbf16>
      %c0_57 = arith.constant 0 : index
      %c0_58 = arith.constant 0 : index
      %c0_59 = arith.constant 0 : index
      %99 = vector.load %arg10[%c0_57, %c0_58, %c0_59] : memref<9x4x128xbf16, #tpu.memory_space<vmem>>, vector<9x4x128xbf16>
      tpu.vector_store %arg10[%c0_57, %c0_58, %c0_59], %98 {strides = array<i32>} : memref<9x4x128xbf16, #tpu.memory_space<vmem>>, vector<9x4x128xbf16>,
    } else {
    }
    %c0 = arith.constant 0 : index
    %c0_1 = arith.constant 0 : index
    %c0_2 = arith.constant 0 : index
    %c0_3 = arith.constant 0 : index
    %3 = vector.load %arg6[%c0, %c0_1, %c0_2, %c0_3] : memref<1x10x18x4xbf16, #tpu.memory_space<vmem>>, vector<1x10x18x4xbf16>
    %4 = vector.shape_cast %3 : vector<1x10x18x4xbf16> to vector<10x18x4xbf16>
    %cst = arith.constant 0.000000e+00 : f32
    %5 = vector.broadcast %cst : f32 to vector<128x128xf32>
    %6 = vector.extract_strided_slice %4 {offsets = [0, 0, 0], sizes = [8, 16, 4], strides = [1, 1, 1]} : vector<10x18x4xbf16> to vector<8x16x4xbf16>
    %7 = vector.shape_cast %6 : vector<8x16x4xbf16> to vector<128x4xbf16>
    %c0_4 = arith.constant 0 : index
    %c0_5 = arith.constant 0 : index
    %c0_6 = arith.constant 0 : index
    %8 = vector.load %arg10[%c0_4, %c0_5, %c0_6] : memref<9x4x128xbf16, #tpu.memory_space<vmem>>, vector<1x4x128xbf16>
    %9 = vector.shape_cast %8 : vector<1x4x128xbf16> to vector<4x128xbf16>
    %cst_7 = arith.constant dense<0.000000e+00> : vector<128x128xf32>
    %10 = tpu.matmul %7, %9, %cst_7 {dimension_numbers = #tpu.dot_dimension_numbers<[1], [0], [0], [1], [0, 0, 1, 1], [], []>} : vector<128x4xbf16>, vector<4x128xbf16>, vector<128x128xf32> -> vector<128x128xf32>
    %11 = arith.addf %5, %10 : vector<128x128xf32>
    %12 = vector.extract_strided_slice %4 {offsets = [0, 1, 0], sizes = [8, 16, 4], strides = [1, 1, 1]} : vector<10x18x4xbf16> to vector<8x16x4xbf16>
    %13 = vector.shape_cast %12 : vector<8x16x4xbf16> to vector<128x4xbf16>
    %c1 = arith.constant 1 : index
    %c0_8 = arith.constant 0 : index
    %c0_9 = arith.constant 0 : index
    %14 = vector.load %arg10[%c1, %c0_8, %c0_9] : memref<9x4x128xbf16, #tpu.memory_space<vmem>>, vector<1x4x128xbf16>
    %15 = vector.shape_cast %14 : vector<1x4x128xbf16> to vector<4x128xbf16>
    %cst_10 = arith.constant dense<0.000000e+00> : vector<128x128xf32>
    %16 = tpu.matmul %13, %15, %cst_10 {dimension_numbers = #tpu.dot_dimension_numbers<[1], [0], [0], [1], [0, 0, 1, 1], [], []>} : vector<128x4xbf16>, vector<4x128xbf16>, vector<128x128xf32> -> vector<128x128xf32>
    %17 = arith.addf %11, %16 : vector<128x128xf32>
    %18 = vector.extract_strided_slice %4 {offsets = [0, 2, 0], sizes = [8, 16, 4], strides = [1, 1, 1]} : vector<10x18x4xbf16> to vector<8x16x4xbf16>
    %19 = vector.shape_cast %18 : vector<8x16x4xbf16> to vector<128x4xbf16>
    %c2 = arith.constant 2 : index
    %c0_11 = arith.constant 0 : index
    %c0_12 = arith.constant 0 : index
    %20 = vector.load %arg10[%c2, %c0_11, %c0_12] : memref<9x4x128xbf16, #tpu.memory_space<vmem>>, vector<1x4x128xbf16>
    %21 = vector.shape_cast %20 : vector<1x4x128xbf16> to vector<4x128xbf16>
    %cst_13 = arith.constant dense<0.000000e+00> : vector<128x128xf32>
    %22 = tpu.matmul %19, %21, %cst_13 {dimension_numbers = #tpu.dot_dimension_numbers<[1], [0], [0], [1], [0, 0, 1, 1], [], []>} : vector<128x4xbf16>, vector<4x128xbf16>, vector<128x128xf32> -> vector<128x128xf32>
    %23 = arith.addf %17, %22 : vector<128x128xf32>
    %24 = vector.extract_strided_slice %4 {offsets = [1, 0, 0], sizes = [8, 16, 4], strides = [1, 1, 1]} : vector<10x18x4xbf16> to vector<8x16x4xbf16>
    %25 = vector.shape_cast %24 : vector<8x16x4xbf16> to vector<128x4xbf16>
    %c3 = arith.constant 3 : index
    %c0_14 = arith.constant 0 : index
    %c0_15 = arith.constant 0 : index
    %26 = vector.load %arg10[%c3, %c0_14, %c0_15] : memref<9x4x128xbf16, #tpu.memory_space<vmem>>, vector<1x4x128xbf16>
    %27 = vector.shape_cast %26 : vector<1x4x128xbf16> to vector<4x128xbf16>
    %cst_16 = arith.constant dense<0.000000e+00> : vector<128x128xf32>
    %28 = tpu.matmul %25, %27, %cst_16 {dimension_numbers = #tpu.dot_dimension_numbers<[1], [0], [0], [1], [0, 0, 1, 1], [], []>} : vector<128x4xbf16>, vector<4x128xbf16>, vector<128x128xf32> -> vector<128x128xf32>
    %29 = arith.addf %23, %28 : vector<128x128xf32>
    %30 = vector.extract_strided_slice %4 {offsets = [1, 1, 0], sizes = [8, 16, 4], strides = [1, 1, 1]} : vector<10x18x4xbf16> to vector<8x16x4xbf16>
    %31 = vector.shape_cast %30 : vector<8x16x4xbf16> to vector<128x4xbf16>
    %c4 = arith.constant 4 : index
    %c0_17 = arith.constant 0 : index
    %c0_18 = arith.constant 0 : index
    %32 = vector.load %arg10[%c4, %c0_17, %c0_18] : memref<9x4x128xbf16, #tpu.memory_space<vmem>>, vector<1x4x128xbf16>
    %33 = vector.shape_cast %32 : vector<1x4x128xbf16> to vector<4x128xbf16>
    %cst_19 = arith.constant dense<0.000000e+00> : vector<128x128xf32>
    %34 = tpu.matmul %31, %33, %cst_19 {dimension_numbers = #tpu.dot_dimension_numbers<[1], [0], [0], [1], [0, 0, 1, 1], [], []>} : vector<128x4xbf16>, vector<4x128xbf16>, vector<128x128xf32> -> vector<128x128xf32>
    %35 = arith.addf %29, %34 : vector<128x128xf32>
    %36 = vector.extract_strided_slice %4 {offsets = [1, 2, 0], sizes = [8, 16, 4], strides = [1, 1, 1]} : vector<10x18x4xbf16> to vector<8x16x4xbf16>
    %37 = vector.shape_cast %36 : vector<8x16x4xbf16> to vector<128x4xbf16>
    %c5 = arith.constant 5 : index
    %c0_20 = arith.constant 0 : index
    %c0_21 = arith.constant 0 : index
    %38 = vector.load %arg10[%c5, %c0_20, %c0_21] : memref<9x4x128xbf16, #tpu.memory_space<vmem>>, vector<1x4x128xbf16>
    %39 = vector.shape_cast %38 : vector<1x4x128xbf16> to vector<4x128xbf16>
    %cst_22 = arith.constant dense<0.000000e+00> : vector<128x128xf32>
    %40 = tpu.matmul %37, %39, %cst_22 {dimension_numbers = #tpu.dot_dimension_numbers<[1], [0], [0], [1], [0, 0, 1, 1], [], []>} : vector<128x4xbf16>, vector<4x128xbf16>, vector<128x128xf32> -> vector<128x128xf32>
    %41 = arith.addf %35, %40 : vector<128x128xf32>
    %42 = vector.extract_strided_slice %4 {offsets = [2, 0, 0], sizes = [8, 16, 4], strides = [1, 1, 1]} : vector<10x18x4xbf16> to vector<8x16x4xbf16>
    %43 = vector.shape_cast %42 : vector<8x16x4xbf16> to vector<128x4xbf16>
    %c6 = arith.constant 6 : index
    %c0_23 = arith.constant 0 : index
    %c0_24 = arith.constant 0 : index
    %44 = vector.load %arg10[%c6, %c0_23, %c0_24] : memref<9x4x128xbf16, #tpu.memory_space<vmem>>, vector<1x4x128xbf16>
    %45 = vector.shape_cast %44 : vector<1x4x128xbf16> to vector<4x128xbf16>
    %cst_25 = arith.constant dense<0.000000e+00> : vector<128x128xf32>
    %46 = tpu.matmul %43, %45, %cst_25 {dimension_numbers = #tpu.dot_dimension_numbers<[1], [0], [0], [1], [0, 0, 1, 1], [], []>} : vector<128x4xbf16>, vector<4x128xbf16>, vector<128x128xf32> -> vector<128x128xf32>
    %47 = arith.addf %41, %46 : vector<128x128xf32>
    %48 = vector.extract_strided_slice %4 {offsets = [2, 1, 0], sizes = [8, 16, 4], strides = [1, 1, 1]} : vector<10x18x4xbf16> to vector<8x16x4xbf16>
    %49 = vector.shape_cast %48 : vector<8x16x4xbf16> to vector<128x4xbf16>
    %c7 = arith.constant 7 : index
    %c0_26 = arith.constant 0 : index
    %c0_27 = arith.constant 0 : index
    %50 = vector.load %arg10[%c7, %c0_26, %c0_27] : memref<9x4x128xbf16, #tpu.memory_space<vmem>>, vector<1x4x128xbf16>
    %51 = vector.shape_cast %50 : vector<1x4x128xbf16> to vector<4x128xbf16>
    %cst_28 = arith.constant dense<0.000000e+00> : vector<128x128xf32>
    %52 = tpu.matmul %49, %51, %cst_28 {dimension_numbers = #tpu.dot_dimension_numbers<[1], [0], [0], [1], [0, 0, 1, 1], [], []>} : vector<128x4xbf16>, vector<4x128xbf16>, vector<128x128xf32> -> vector<128x128xf32>
    %53 = arith.addf %47, %52 : vector<128x128xf32>
    %54 = vector.extract_strided_slice %4 {offsets = [2, 2, 0], sizes = [8, 16, 4], strides = [1, 1, 1]} : vector<10x18x4xbf16> to vector<8x16x4xbf16>
    %55 = vector.shape_cast %54 : vector<8x16x4xbf16> to vector<128x4xbf16>
    %c8 = arith.constant 8 : index
    %c0_29 = arith.constant 0 : index
    %c0_30 = arith.constant 0 : index
    %56 = vector.load %arg10[%c8, %c0_29, %c0_30] : memref<9x4x128xbf16, #tpu.memory_space<vmem>>, vector<1x4x128xbf16>
    %57 = vector.shape_cast %56 : vector<1x4x128xbf16> to vector<4x128xbf16>
    %cst_31 = arith.constant dense<0.000000e+00> : vector<128x128xf32>
    %58 = tpu.matmul %55, %57, %cst_31 {dimension_numbers = #tpu.dot_dimension_numbers<[1], [0], [0], [1], [0, 0, 1, 1], [], []>} : vector<128x4xbf16>, vector<4x128xbf16>, vector<128x128xf32> -> vector<128x128xf32>
    %59 = arith.addf %53, %58 : vector<128x128xf32>
    %c0_32 = arith.constant 0 : index
    %c0_33 = arith.constant 0 : index
    %60 = vector.load %arg7[%c0_32, %c0_33] : memref<128x1xf32, #tpu.memory_space<vmem>>, vector<128x1xf32>
    %61 = vector.broadcast %60 : vector<128x1xf32> to vector<128x128xf32>
    %62 = arith.addf %59, %61 : vector<128x128xf32>
    %c0_34 = arith.constant 0 : index
    %c0_35 = arith.constant 0 : index
    %63 = vector.load %arg8[%c0_34, %c0_35] : memref<1x128xf32, #tpu.memory_space<vmem>>, vector<1x128xf32>
    %64 = vector.broadcast %63 : vector<1x128xf32> to vector<128x128xf32>
    %65 = arith.addf %62, %64 : vector<128x128xf32>
    %cst_36 = arith.constant 0.000000e+00 : f32
    %66 = vector.broadcast %cst_36 : f32 to vector<128x128xf32>
    %67 = arith.cmpf oge, %65, %66 : vector<128x128xf32>
    %cst_37 = arith.constant 2.000000e-01 : f32
    %68 = vector.broadcast %cst_37 : f32 to vector<128x128xf32>
    %69 = arith.mulf %68, %65 : vector<128x128xf32>
    %70 = arith.select %67, %65, %69 : vector<128x128xi1>, vector<128x128xf32>
    %cst_38 = arith.constant 1.41421354 : f32
    %71 = vector.broadcast %cst_38 : f32 to vector<128x128xf32>
    %72 = arith.mulf %70, %71 : vector<128x128xf32>
    %c0_39 = arith.constant 0 : index
    %c0_40 = arith.constant 0 : index
    %c0_41 = arith.constant 0 : index
    %73 = vector.load %arg9[%c0_39, %c0_40, %c0_41] : memref<1x128x128xf32, #tpu.memory_space<vmem>>, vector<1x128x128xf32>
    %74 = vector.shape_cast %73 : vector<1x128x128xf32> to vector<128x128xf32>
    %75 = vector.shape_cast %72 : vector<128x128xf32> to vector<1x128x128xf32>
    tpu.vector_store %arg9[%c0_39, %c0_40, %c0_41], %75 {strides = array<i32>} : memref<1x128x128xf32, #tpu.memory_space<vmem>>, vector<1x128x128xf32>,
    return
  }
  func.func @transform_0(%arg0: i32, %arg1: i32) -> (i32, i32, i32) {
    %c0_i32 = arith.constant 0 : i32
    %c0_i32_0 = arith.constant 0 : i32
    %c0_i32_1 = arith.constant 0 : i32
    return %arg0, %c0_i32, %c0_i32_0 : i32, i32, i32
  }
  func.func @transform_1(%arg0: i32, %arg1: i32) -> (i32, i32) {
    %c0_i32 = arith.constant 0 : i32
    %c0_i32_0 = arith.constant 0 : i32
    %c0_i32_1 = arith.constant 0 : i32
    return %c0_i32, %c0_i32_0 : i32, i32
  }
  func.func @transform_2(%arg0: i32, %arg1: i32) -> (i32, i32) {
    %c0_i32 = arith.constant 0 : i32
    %c0_i32_0 = arith.constant 0 : i32
    %c0_i32_1 = arith.constant 0 : i32
    return %c0_i32, %c0_i32_0 : i32, i32
  }
  func.func @transform_3(%arg0: i32, %arg1: i32) -> (i32, i32, i32) {
    %c0_i32 = arith.constant 0 : i32
    %c0_i32_0 = arith.constant 0 : i32
    %c0_i32_1 = arith.constant 0 : i32
    %c0_i32_2 = arith.constant 0 : i32
    return %c0_i32, %c0_i32_0, %c0_i32_1 : i32, i32, i32
  }
  func.func @transform_4(%arg0: i32, %arg1: i32) -> (i32, i32, i32, i32) {
    %c2_i32 = arith.constant 2 : i32
    %0 = arith.muli %arg0, %c2_i32 : i32
    %1 = arith.addi %0, %arg1 : i32
    %c0_i32 = arith.constant 0 : i32
    %c0_i32_0 = arith.constant 0 : i32
    %c0_i32_1 = arith.constant 0 : i32
    %c0_i32_2 = arith.constant 0 : i32
    return %1, %c0_i32, %c0_i32_0, %c0_i32_1 : i32, i32, i32, i32
  }
  func.func @transform_5(%arg0: i32, %arg1: i32) -> (i32, i32) {
    %c0_i32 = arith.constant 0 : i32
    %c0_i32_0 = arith.constant 0 : i32
    return %arg1, %c0_i32 : i32, i32
  }
  func.func @transform_6(%arg0: i32, %arg1: i32) -> (i32, i32) {
    %c0_i32 = arith.constant 0 : i32
    %c0_i32_0 = arith.constant 0 : i32
    %c0_i32_1 = arith.constant 0 : i32
    return %c0_i32, %c0_i32_0 : i32, i32
  }
  func.func @transform_7(%arg0: i32, %arg1: i32) -> (i32, i32, i32) {
    %c0_i32 = arith.constant 0 : i32
    %c0_i32_0 = arith.constant 0 : i32
    return %arg0, %arg1, %c0_i32 : i32, i32, i32
  }
}

</mosaic_0001>

<llo_original>
// kernel: tpu_custom_call.1
$region0: #{tpu_custom_call.1}
  #allocation0 [shape = 'u32[]', space=smem, size = 0x4, offset = 0x4, fixed_abs, tag = 'smem constant byte address 0x4 - core index']
  #allocation1 [shape = 'u32[144,128]{1,0:T(1,128)}', space=vmem, size = 0x12000, scoped, tag = 'internal scratch']
  #allocation2 [shape = 'bf16[9,4,128]{2,1,0:T(4,128)(2,1)}', space=vmem, size = 0x2400, scoped, tag = 'scratch operand']
  %s0 = inlined_call_operand.vmem [shape: f32[2,16,1], index: 0, kind: input, shape index: {}]
  %s1 = inlined_call_operand.vmem [shape: f32[4,16], index: 1, kind: input, shape index: {}]
  %s2 = inlined_call_operand.vmem [shape: f32[4,1], index: 2, kind: input, shape index: {}]
  %s3 = inlined_call_operand.vmem [shape: f32[9,4,128], index: 3, kind: input, shape index: {}]
  %s4 = inlined_call_operand.vmem [shape: bf16[4,10,18,4], index: 4, kind: input, shape index: {}]
  %s5 = inlined_call_operand.vmem [shape: f32[256,1], index: 5, kind: input, shape index: {}]
  %s6 = inlined_call_operand.vmem [shape: f32[1,128], index: 6, kind: input, shape index: {}]
  %s7 = inlined_call_operand.hbm [shape: f32[2,256,128], index: 7, kind: output, shape index: {}]
  %s8 = sld [smem:[#allocation0]]
  $region65: #{tpu_custom_call.1} parent=0
    _
  %s10 = ssub.s32 1, %s8
  %s11 = scalar_select 0, %s10, %s8
  $region1: #{tpu_custom_call.1} parent=0
    #allocation3 [shape = 'u8[131072]{0}', space=vmem, size = 0x20000, scoped, tag = 'output window, operand 0']
    #allocation4 [shape = 's32[2]{0}', space=sflag, size = 0x8, scoped, tag = 'scoped memory for tpu_custom_call.1']
    %12 = vsyncpa [#allocation4], 0
    %s13 = scalar_lea.sflag [#allocation4], 1
    %14 = vsyncpa %s13, 0
    loop: start=0, step=1, limit=6
    $region2: #{tpu_custom_call.1} parent=1 // loop_pre_header
      _
    $region3: #{tpu_custom_call.1} parent=1 // loop_header
      %s16 = sphi 0, %s20
      %p17 = scmp.ge.s32.totalorder %s16, 6
      %s23 = sphi 0, %s35
      %s24 = sphi 0, %s31
      %s25 = sphi 0, %s23
      %s26 = sphi 0, %s24
      %s27 = sphi 0, %s25
      %s28 = sphi 0, %s26
      %s38 = sphi 0, %s40
      %s41 = sphi 0, %s38
      %s42 = sphi 0, %s41
      %s58 = sphi 0, %s42
      %s62 = sphi 0, %s62
      %s64 = sphi 0, %s62
      %s65 = sphi 0, %s64
      %s79 = sphi 0, %s65
      %s83 = sphi 0, %s83
      %s85 = sphi 0, %s83
      %s86 = sphi 0, %s85
      %s100 = sphi 0, %s86
      %s104 = sphi 0, %s104
      %s106 = sphi 0, %s104
      %s107 = sphi 0, %s106
      %s121 = sphi 0, %s107
      %s131 = sphi 0, %s133
      %s134 = sphi 0, %s131
      %s135 = sphi 0, %s134
      %s151 = sphi 0, %s135
      %s157 = sphi 0, %s159
      %s160 = sphi 0, %s157
      %s161 = sphi 0, %s160
      %s177 = sphi 0, %s161
      %s181 = sphi 0, %s181
      %s183 = sphi 0, %s181
      %s184 = sphi 0, %s183
      %s198 = sphi 0, %s184
      %s206 = sphi 0, %s208
      %s209 = sphi 0, %s206
      %s210 = sphi 0, %s209
      %s226 = sphi 0, %s210
    $region4: #{tpu_custom_call.1} parent=1 // loop_header_branch
      %19 = sbr.rel (%p17) target = $region8
    $region5: #{tpu_custom_call.1} parent=1 // loop_body
      %s21 = ssub.s32 %s16, 1
      %s22 = ssub.s32 %s16, 2
      %s29 = sadd.s32 1, %s24
      %p30 = scmp.ge.s32.totalorder %s29, 2
      %s31 = scalar_select %p30, 0, %s29
      %s32 = sadd.s32 1, %s23
      %s33 = scalar_select %p30, %s32, %s23
      %p34 = scmp.ge.s32.totalorder %s33, 2
      %s35 = scalar_select %p34, 0, %s33
      %s36 = ssub.s32 %s23, %s35
      %p37 = scmp.eq.s32.totalorder %s36, 0
      %s39 = sadd.s32 %s38, 1
      %s40 = scalar_select %p37, %s38, %s39
      %p43 = pneg %p37
      %p44 = scmp.eq.s32.totalorder %s16, 3
      %p45 = por %p43, %p44
      %p46 = scmp.ne.s32.totalorder %s38, %s41
      %p47 = scmp.eq.s32.totalorder %s16, 0
      %p48 = por %p46, %p47
      %p49 = scmp.ne.s32.totalorder %s38, %s41
      %p50 = scmp.eq.s32.totalorder %s21, 3
      %p51 = por %p49, %p50
      %p52 = scmp.ne.s32.totalorder %s41, %s42
      %p53 = scmp.eq.s32.totalorder %s21, 0
      %p54 = por %p52, %p53
      %p55 = scmp.ne.s32.totalorder %s41, %s42
      %p56 = scmp.eq.s32.totalorder %s22, 3
      %p57 = por %p55, %p56
      %p59 = scmp.ne.s32.totalorder %s42, %s58
      %p60 = scmp.eq.s32.totalorder %s22, 0
      %p61 = por %p59, %p60
      %s63 = sadd.s32 %s62, 1
      %p66 = scmp.eq.s32.totalorder %s16, 3
      %p67 = scmp.ne.s32.totalorder %s62, %s64
      %p68 = scmp.eq.s32.totalorder %s16, 0
      %p69 = por %p67, %p68
      %p70 = scmp.ne.s32.totalorder %s62, %s64
      %p71 = scmp.eq.s32.totalorder %s21, 3
      %p72 = por %p70, %p71
      %p73 = scmp.ne.s32.totalorder %s64, %s65
      %p74 = scmp.eq.s32.totalorder %s21, 0
      %p75 = por %p73, %p74
      %p76 = scmp.ne.s32.totalorder %s64, %s65
      %p77 = scmp.eq.s32.totalorder %s22, 3
      %p78 = por %p76, %p77
      %p80 = scmp.ne.s32.totalorder %s65, %s79
      %p81 = scmp.eq.s32.totalorder %s22, 0
      %p82 = por %p80, %p81
      %s84 = sadd.s32 %s83, 1
      %p87 = scmp.eq.s32.totalorder %s16, 3
      %p88 = scmp.ne.s32.totalorder %s83, %s85
      %p89 = scmp.eq.s32.totalorder %s16, 0
      %p90 = por %p88, %p89
      %p91 = scmp.ne.s32.totalorder %s83, %s85
      %p92 = scmp.eq.s32.totalorder %s21, 3
      %p93 = por %p91, %p92
      %p94 = scmp.ne.s32.totalorder %s85, %s86
      %p95 = scmp.eq.s32.totalorder %s21, 0
      %p96 = por %p94, %p95
      %p97 = scmp.ne.s32.totalorder %s85, %s86
      %p98 = scmp.eq.s32.totalorder %s22, 3
      %p99 = por %p97, %p98
      %p101 = scmp.ne.s32.totalorder %s86, %s100
      %p102 = scmp.eq.s32.totalorder %s22, 0
      %p103 = por %p101, %p102
      %s105 = sadd.s32 %s104, 1
      %p108 = scmp.eq.s32.totalorder %s16, 3
      %p109 = scmp.ne.s32.totalorder %s104, %s106
      %p110 = scmp.eq.s32.totalorder %s16, 0
      %p111 = por %p109, %p110
      %p112 = scmp.ne.s32.totalorder %s104, %s106
      %p113 = scmp.eq.s32.totalorder %s21, 3
      %p114 = por %p112, %p113
      %p115 = scmp.ne.s32.totalorder %s106, %s107
      %p116 = scmp.eq.s32.totalorder %s21, 0
      %p117 = por %p115, %p116
      %p118 = scmp.ne.s32.totalorder %s106, %s107
      %p119 = scmp.eq.s32.totalorder %s22, 3
      %p120 = por %p118, %p119
      %p122 = scmp.ne.s32.totalorder %s107, %s121
      %p123 = scmp.eq.s32.totalorder %s22, 0
      %p124 = por %p122, %p123
      %s125 = smul.u32 %s23, 2
      %s126 = sadd.s32 %s125, %s24
      %s127 = smul.u32 %s35, 2
      %s128 = sadd.s32 %s127, %s31
      %s129 = ssub.s32 %s126, %s128
      %p130 = scmp.eq.s32.totalorder %s129, 0
      %s132 = sadd.s32 %s131, 1
      %s133 = scalar_select %p130, %s131, %s132
      %p136 = pneg %p130
      %p137 = scmp.eq.s32.totalorder %s16, 3
      %p138 = por %p136, %p137
      %p139 = scmp.ne.s32.totalorder %s131, %s134
      %p140 = scmp.eq.s32.totalorder %s16, 0
      %p141 = por %p139, %p140
      %p142 = scmp.ne.s32.totalorder %s131, %s134
      %p143 = scmp.eq.s32.totalorder %s21, 3
      %p144 = por %p142, %p143
      %p145 = scmp.ne.s32.totalorder %s134, %s135
      %p146 = scmp.eq.s32.totalorder %s21, 0
      %p147 = por %p145, %p146
      %p148 = scmp.ne.s32.totalorder %s134, %s135
      %p149 = scmp.eq.s32.totalorder %s22, 3
      %p150 = por %p148, %p149
      %p152 = scmp.ne.s32.totalorder %s135, %s151
      %p153 = scmp.eq.s32.totalorder %s22, 0
      %p154 = por %p152, %p153
      %s155 = ssub.s32 %s24, %s31
      %p156 = scmp.eq.s32.totalorder %s155, 0
      %s158 = sadd.s32 %s157, 1
      %s159 = scalar_select %p156, %s157, %s158
      %p162 = pneg %p156
      %p163 = scmp.eq.s32.totalorder %s16, 3
      %p164 = por %p162, %p163
      %p165 = scmp.ne.s32.totalorder %s157, %s160
      %p166 = scmp.eq.s32.totalorder %s16, 0
      %p167 = por %p165, %p166
      %p168 = scmp.ne.s32.totalorder %s157, %s160
      %p169 = scmp.eq.s32.totalorder %s21, 3
      %p170 = por %p168, %p169
      %p171 = scmp.ne.s32.totalorder %s160, %s161
      %p172 = scmp.eq.s32.totalorder %s21, 0
      %p173 = por %p171, %p172
      %p174 = scmp.ne.s32.totalorder %s160, %s161
      %p175 = scmp.eq.s32.totalorder %s22, 3
      %p176 = por %p174, %p175
      %p178 = scmp.ne.s32.totalorder %s161, %s177
      %p179 = scmp.eq.s32.totalorder %s22, 0
      %p180 = por %p178, %p179
      %s182 = sadd.s32 %s181, 1
      %p185 = scmp.eq.s32.totalorder %s16, 3
      %p186 = scmp.ne.s32.totalorder %s181, %s183
      %p187 = scmp.eq.s32.totalorder %s16, 0
      %p188 = por %p186, %p187
      %p189 = scmp.ne.s32.totalorder %s181, %s183
      %p190 = scmp.eq.s32.totalorder %s21, 3
      %p191 = por %p189, %p190
      %p192 = scmp.ne.s32.totalorder %s183, %s184
      %p193 = scmp.eq.s32.totalorder %s21, 0
      %p194 = por %p192, %p193
      %p195 = scmp.ne.s32.totalorder %s183, %s184
      %p196 = scmp.eq.s32.totalorder %s22, 3
      %p197 = por %p195, %p196
      %p199 = scmp.ne.s32.totalorder %s184, %s198
      %p200 = scmp.eq.s32.totalorder %s22, 0
      %p201 = por %p199, %p200
      %s202 = ssub.s32 %s23, %s35
      %s203 = ssub.s32 %s24, %s31
      %s204 = sor.u32 %s202, %s203
      %p205 = scmp.eq.s32.totalorder %s204, 0
      %s207 = sadd.s32 %s206, 1
      %s208 = scalar_select %p205, %s206, %s207
      %p211 = pneg %p205
      %p212 = scmp.eq.s32.totalorder %s16, 3
      %p213 = por %p211, %p212
      %p214 = scmp.ne.s32.totalorder %s206, %s209
      %p215 = scmp.eq.s32.totalorder %s16, 0
      %p216 = por %p214, %p215
      %p217 = scmp.ne.s32.totalorder %s206, %s209
      %p218 = scmp.eq.s32.totalorder %s21, 3
      %p219 = por %p217, %p218
      %p220 = scmp.ne.s32.totalorder %s209, %s210
      %p221 = scmp.eq.s32.totalorder %s21, 0
      %p222 = por %p220, %p221
      %p223 = scmp.ne.s32.totalorder %s209, %s210
      %p224 = scmp.eq.s32.totalorder %s22, 3
      %p225 = por %p223, %p224
      %p227 = scmp.ne.s32.totalorder %s210, %s226
      %p228 = scmp.eq.s32.totalorder %s22, 0
      %p229 = por %p227, %p228
      %p230 = scmp.le.s32.totalorder 1, %s16
      %p231 = scmp.lt.s32.totalorder %s16, 5
      %p232 = pnand %p230, %p231
      %p233 = pneg %p232
      // Predicated region
      $region9: #{tpu_custom_call.1} parent=5 // pred_check
        _
      $region10: #{tpu_custom_call.1} parent=5 // pred_check_branch
        %235 = sbr.rel (%p232) target = $region12
      $region11: #{tpu_custom_call.1} parent=5 // pred_region
        %s236 = ssub.s32 %s16, 1
        // Predicated region
        $region13: #{tpu_custom_call.1} parent=11 // pred_check
          %p237 = pneg %p75
        $region14: #{tpu_custom_call.1} parent=11 // pred_check_branch
          %239 = sbr.rel (%p237) target = $region16
        $region15: #{tpu_custom_call.1} parent=11 // pred_region
          _
        $region16: #{tpu_custom_call.1} parent=11 // pred_fallthru
          _
        // Predicated region
        $region17: #{tpu_custom_call.1} parent=11 // pred_check
          %p240 = pneg %p96
        $region18: #{tpu_custom_call.1} parent=11 // pred_check_branch
          %242 = sbr.rel (%p240) target = $region20
        $region19: #{tpu_custom_call.1} parent=11 // pred_region
          _
        $region20: #{tpu_custom_call.1} parent=11 // pred_fallthru
          _
        // Predicated region
        $region21: #{tpu_custom_call.1} parent=11 // pred_check
          %p243 = pneg %p117
        $region22: #{tpu_custom_call.1} parent=11 // pred_check_branch
          %245 = sbr.rel (%p243) target = $region24
        $region23: #{tpu_custom_call.1} parent=11 // pred_region
          _
        $region24: #{tpu_custom_call.1} parent=11 // pred_fallthru
          _
        // Predicated region
        $region25: #{tpu_custom_call.1} parent=11 // pred_check
          %p246 = pneg %p194
        $region26: #{tpu_custom_call.1} parent=11 // pred_check_branch
          %248 = sbr.rel (%p246) target = $region28
        $region27: #{tpu_custom_call.1} parent=11 // pred_region
          _
        $region28: #{tpu_custom_call.1} parent=11 // pred_fallthru
          _
      $region12: #{tpu_custom_call.1} parent=5 // pred_fallthru
        _
      %p249 = scmp.lt.s32.totalorder %s16, 4
      // Predicated region
      $region29: #{tpu_custom_call.1} parent=5 // pred_check
        %p250 = pneg %p249
      $region30: #{tpu_custom_call.1} parent=5 // pred_check_branch
        %252 = sbr.rel (%p250) target = $region32
      $region31: #{tpu_custom_call.1} parent=5 // pred_region
        // Predicated region
        $region33: #{tpu_custom_call.1} parent=31 // pred_check
          %p253 = pneg %p48
        $region34: #{tpu_custom_call.1} parent=31 // pred_check_branch
          %255 = sbr.rel (%p253) target = $region36
        $region35: #{tpu_custom_call.1} parent=31 // pred_region
          %p256 = scmp.lt.s32.totalorder %s23, 1
          %s257 = scalar_select %p256, %s23, 1
          %s258 = smul.addr %s257, 2
          %s259 = smul.addr %s258, 8
          %s260 = scalar_lea.vmem %s0, %s259
        $region36: #{tpu_custom_call.1} parent=31 // pred_fallthru
          _
        // Predicated region
        $region37: #{tpu_custom_call.1} parent=31 // pred_check
          %p261 = pneg %p141
        $region38: #{tpu_custom_call.1} parent=31 // pred_check_branch
          %263 = sbr.rel (%p261) target = $region40
        $region39: #{tpu_custom_call.1} parent=31 // pred_region
          %s264 = smul.u32 %s23, 2
          %s265 = sadd.s32 %s264, %s24
          %p266 = scmp.lt.s32.totalorder %s265, 3
          %s267 = scalar_select %p266, %s265, 3
          %s268 = smul.addr %s267, 30
          %s269 = smul.addr %s268, 4
          %s270 = scalar_lea.vmem %s4, %s269
          %s271 = smul.u32 %s23, 2
          %s272 = sadd.s32 %s271, %s24
        $region40: #{tpu_custom_call.1} parent=31 // pred_fallthru
          _
        // Predicated region
        $region41: #{tpu_custom_call.1} parent=31 // pred_check
          %p273 = pneg %p167
        $region42: #{tpu_custom_call.1} parent=31 // pred_check_branch
          %275 = sbr.rel (%p273) target = $region44
        $region43: #{tpu_custom_call.1} parent=31 // pred_region
          %s276 = smul.u32 16, %s24
          %p277 = scmp.lt.s32.totalorder %s276, 31
          %s278 = scalar_select %p277, %s276, 31
          %s279 = smul.addr %s278, 8
          %s280 = scalar_lea.vmem %s5, %s279
          %s281 = smul.u32 16, %s24
        $region44: #{tpu_custom_call.1} parent=31 // pred_fallthru
          _
      $region32: #{tpu_custom_call.1} parent=5 // pred_fallthru
        _
      %p282 = scmp.le.s32.totalorder 1, %s16
      %p283 = scmp.lt.s32.totalorder %s16, 5
      %p284 = pnand %p282, %p283
      %p285 = pneg %p284
      // Predicated region
      $region45: #{tpu_custom_call.1} parent=5 // pred_check
        _
      $region46: #{tpu_custom_call.1} parent=5 // pred_check_branch
        %287 = sbr.rel (%p284) target = $region48
      $region47: #{tpu_custom_call.1} parent=5 // pred_region
        %s288 = ssub.s32 %s16, 1
        %p289 = scmp.lt.s32.totalorder %s25, 1
        %s290 = scalar_select %p289, %s25, 1
        %s291 = smul.addr %s290, 2
        %s292 = smul.addr %s291, 8
        %s293 = scalar_lea.vmem %s0, %s292
        %p294 = pneg %p54
        %p295 = pneg %p51
        %p296 = pneg %p75
        %p297 = pneg %p72
        %p298 = pneg %p96
        %p299 = pneg %p93
        %p300 = pneg %p117
        %p301 = pneg %p114
        %s302 = smul.u32 %s25, 2
        %s303 = sadd.s32 %s302, %s26
        %p304 = scmp.lt.s32.totalorder %s303, 3
        %s305 = scalar_select %p304, %s303, 3
        %s306 = smul.addr %s305, 30
        %s307 = smul.addr %s306, 4
        %s308 = scalar_lea.vmem %s4, %s307
        %p309 = pneg %p147
        %p310 = pneg %p144
        %s311 = smul.u32 16, %s26
        %p312 = scmp.lt.s32.totalorder %s311, 31
        %s313 = scalar_select %p312, %s311, 31
        %s314 = smul.addr %s313, 8
        %s315 = scalar_lea.vmem %s5, %s314
        %p316 = pneg %p173
        %p317 = pneg %p170
        %p318 = pneg %p194
        %p319 = pneg %p191
        %p320 = pneg %p222
        %p321 = pneg %p219
        %s322 = sand.u32 %s209, 1
        %s323 = scalar_lea.sflag [#allocation4], %s322
        %s324 = sand.u32 %s209, 1
        %s325 = smul.addr %s324, 128
        %s326 = scalar_lea.vmem [#allocation3], %s325
        %p327 = scmp.lt.s32.totalorder %s25, 1
        %s328 = scalar_select %p327, %s25, 1
        %s329 = smul.addr %s328, 2
        %s330 = smul.addr %s329, 8
        %s331 = scalar_lea.vmem %s0, %s330
        %s332 = smul.u32 %s25, 2
        %s333 = sadd.s32 %s332, %s26
        %p334 = scmp.lt.s32.totalorder %s333, 3
        %s335 = scalar_select %p334, %s333, 3
        %s336 = smul.addr %s335, 30
        %s337 = smul.addr %s336, 4
        %s338 = scalar_lea.vmem %s4, %s337
        %s339 = smul.u32 %s25, 2
        %s340 = sadd.s32 %s339, %s26
        %s341 = smul.u32 16, %s26
        %p342 = scmp.lt.s32.totalorder %s341, 31
        %s343 = scalar_select %p342, %s341, 31
        %s344 = smul.addr %s343, 8
        %s345 = scalar_lea.vmem %s5, %s344
        %s346 = smul.u32 16, %s26
        %s347 = smul.u32 16, %s26
        %p349 = scmp.eq.s32.totalorder %s26, 0
        // Predicated region
        $region49: #{tpu_custom_call.1} parent=47 // pred_check
          %p350 = pneg %p349
        $region50: #{tpu_custom_call.1} parent=47 // pred_check_branch
          %352 = sbr.rel (%p350) target = $region52
        $region51: #{tpu_custom_call.1} parent=47 // pred_region
          %v353 = vld [vmem:[%s1] sm:$0xf]
          %v354 = vld [vmem:[%s331] sm:$0xff]
          %v355 = vld [vmem:[%s331 + $0x8] sm:$0xff]
          %vm356 = vcmask 130048
          %v358 = vsel %vm356, %v353, 0
          %360 = vmatprep.subr.mxu0 0.0
          %361 = vmatpush1.msra.mxu0 0.0
          %362 = vmatprep.subr.mxu0 0.0
          %363 = vmatpush1.msra.mxu0 0.0
          %364 = vmatprep.subr.mxu0 0.0
          %365 = vmatpush1.msra.mxu0 0.0
          %366 = vmatprep.subr.mxu0 0.0
          %367 = vmatpush1.msra.mxu0 0.0
          %368 = vmatprep.subr.mxu0 0.0
          %369 = vmatpush1.msra.mxu0 0.0
          %370 = vmatprep.subr.mxu0 0.0
          %371 = vmatpush1.msra.mxu0 0.0
          %372 = vmatprep.subr.mxu0 0.0
          %373 = vmatpush1.msra.mxu0 0.0
          %374 = vmatprep.subr.mxu0 0.0
          %375 = vmatpush1.msra.mxu0 0.0
          %376 = vmatprep.subr.mxu0 0.0
          %377 = vmatpush1.msra.mxu0 0.0
          %378 = vmatprep.subr.mxu0 0.0
          %379 = vmatpush1.msra.mxu0 0.0
          %380 = vmatprep.subr.mxu0 0.0
          %381 = vmatpush1.msra.mxu0 0.0
          %382 = vmatprep.subr.mxu0 0.0
          %383 = vmatpush1.msra.mxu0 0.0
          %384 = vmatprep.subr.mxu0 0.0
          %385 = vmatpush1.msra.mxu0 0.0
          %386 = vmatprep.subr.mxu0 0.0
          %387 = vmatpush1.msra.mxu0 0.0
          %388 = vmatprep.subr.mxu0 0.0
          %389 = vmatpush1.msra.mxu0 %v355
          %390 = vmatprep.subr.mxu0 0.0
          %391 = vmatpush1.msra.mxu0 %v354
          %392 = vmatprep.subr.mxu0 0.0
          %393 = vmatpush2.msra.mxu0 0.0
          %394 = vmatprep.subr.mxu0 0.0
          %395 = vmatpush2.msra.mxu0 0.0
          %396 = vmatprep.subr.mxu0 0.0
          %397 = vmatpush2.msra.mxu0 0.0
          %398 = vmatprep.subr.mxu0 0.0
          %399 = vmatpush2.msra.mxu0 0.0
          %400 = vmatprep.subr.mxu0 0.0
          %401 = vmatpush2.msra.mxu0 0.0
          %402 = vmatprep.subr.mxu0 0.0
          %403 = vmatpush2.msra.mxu0 0.0
          %404 = vmatprep.subr.mxu0 0.0
          %405 = vmatpush2.msra.mxu0 0.0
          %406 = vmatprep.subr.mxu0 0.0
          %407 = vmatpush2.msra.mxu0 0.0
          %408 = vmatprep.subr.mxu0 0.0
          %409 = vmatpush2.msra.mxu0 0.0
          %410 = vmatprep.subr.mxu0 0.0
          %411 = vmatpush2.msra.mxu0 0.0
          %412 = vmatprep.subr.mxu0 0.0
          %413 = vmatpush2.msra.mxu0 0.0
          %414 = vmatprep.subr.mxu0 0.0
          %415 = vmatpush2.msra.mxu0 0.0
          %416 = vmatprep.subr.mxu0 0.0
          %417 = vmatpush2.msra.mxu0 0.0
          %418 = vmatprep.subr.mxu0 0.0
          %419 = vmatpush2.msra.mxu0 0.0
          %420 = vmatprep.subr.mxu0 0.0
          %421 = vmatpush2.msra.mxu0 0.0
          %422 = vmatprep.subr.mxu0 0.0
          %423 = vmatpush2.msra.mxu0 0.0
          %424 = vmatprep.mubr.f32.mxu0 0.0
          %425 = vmatmul.mubr.f32.gmra.mxu0 %v358
          %v426 = vpop.f32.mrf.mxu0
          %v427 = vadd.f32 0.0, %v426
          %v428 = vpop.f32.mrf.mxu0
          %429 = vdwg.mxu0
          %v430 = vmul.f32 %v427, 0.25
          %v431 = vld [vmem:[%s2] sm:$0xf]
          %v432 = vadd.f32 %v430, %v431
          %v433 = vld [vmem:[%s3] sm:$0xf]
          %v434 = vld [vmem:[%s3 + $0x4] sm:$0xf]
          %v435 = vld [vmem:[%s3 + $0x8] sm:$0xf]
          %v436 = vld [vmem:[%s3 + $0xc] sm:$0xf]
          %v437 = vld [vmem:[%s3 + $0x10] sm:$0xf]
          %v438 = vld [vmem:[%s3 + $0x14] sm:$0xf]
          %v439 = vld [vmem:[%s3 + $0x18] sm:$0xf]
          %v440 = vld [vmem:[%s3 + $0x1c] sm:$0xf]
          %v441 = vld [vmem:[%s3 + $0x20] sm:$0xf]
          %443 = vset.pattern.permute.xlu0 0
          %444 = vperm.xlu0 %443, %v432
          %v445 = vpop.permute.xlu0 %444
          %v447 = vmul.f32 %v433, %v445
          %v448 = vmul.f32 %v434, %v445
          %v449 = vmul.f32 %v435, %v445
          %v450 = vmul.f32 %v436, %v445
          %v451 = vmul.f32 %v437, %v445
          %v452 = vmul.f32 %v438, %v445
          %v453 = vmul.f32 %v439, %v445
          %v454 = vmul.f32 %v440, %v445
          %v455 = vmul.f32 %v441, %v445
          %v456 = vmul.f32 %v447, %v447
          %v457 = vmul.f32 %v448, %v448
          %v458 = vmul.f32 %v449, %v449
          %v459 = vmul.f32 %v450, %v450
          %v460 = vmul.f32 %v451, %v451
          %v461 = vmul.f32 %v452, %v452
          %v462 = vmul.f32 %v453, %v453
          %v463 = vmul.f32 %v454, %v454
          %v464 = vmul.f32 %v455, %v455
          %vm465 = vcmask 1043456
          %v466 = vsel %vm465, %v456, 0.0
          %v467 = vsel %vm465, %v457, 0.0
          %v468 = vadd.f32 %v466, %v467
          %v469 = vsel %vm465, %v458, 0.0
          %v470 = vadd.f32 %v468, %v469
          %v471 = vsel %vm465, %v459, 0.0
          %v472 = vadd.f32 %v470, %v471
          %v473 = vsel %vm465, %v460, 0.0
          %v474 = vadd.f32 %v472, %v473
          %v475 = vsel %vm465, %v461, 0.0
          %v476 = vadd.f32 %v474, %v475
          %v477 = vsel %vm465, %v462, 0.0
          %v478 = vadd.f32 %v476, %v477
          %v479 = vsel %vm465, %v463, 0.0
          %v480 = vadd.f32 %v478, %v479
          %v481 = vsel %vm465, %v464, 0.0
          %v482 = vadd.f32 %v480, %v481
          %v483 = vsel %vm465, %v482, 0.0
          %v484 = vrot.slane %v483, 4
          %v485 = vadd.f32 %v483, %v484
          %v486 = vrot.slane %v485, 2
          %v487 = vadd.f32 %v485, %v486
          %v488 = vrot.slane %v487, 1
          %v489 = vadd.f32 %v487, %v488
          %v490 = vadd.f32 %v489, 1e-08
          %v491 = vrsqrt.pop %v490
          %v492 = vmul.f32 %v447, %v491
          %v493 = vmul.f32 %v448, %v491
          %v494 = vmul.f32 %v449, %v491
          %v495 = vmul.f32 %v450, %v491
          %v496 = vmul.f32 %v451, %v491
          %v497 = vmul.f32 %v452, %v491
          %v498 = vmul.f32 %v453, %v491
          %v499 = vmul.f32 %v454, %v491
          %v500 = vmul.f32 %v455, %v491
          %v501 = vpack.c.bf16 %v492, %v492
          %v502 = vpack.c.bf16 %v493, %v493
          %v503 = vpack.c.bf16 %v494, %v494
          %v504 = vpack.c.bf16 %v495, %v495
          %v505 = vpack.c.bf16 %v496, %v496
          %v506 = vpack.c.bf16 %v497, %v497
          %v507 = vpack.c.bf16 %v498, %v498
          %v508 = vpack.c.bf16 %v499, %v499
          %v509 = vpack.c.bf16 %v500, %v500
          %510 = vst [vmem:[#allocation2] sm:$0x3] %v501
          %511 = vst [vmem:[#allocation2 + $0x2] sm:$0x3] %v502
          %512 = vst [vmem:[#allocation2 + $0x4] sm:$0x3] %v503
          %513 = vst [vmem:[#allocation2 + $0x6] sm:$0x3] %v504
          %514 = vst [vmem:[#allocation2 + $0x8] sm:$0x3] %v505
          %515 = vst [vmem:[#allocation2 + $0xa] sm:$0x3] %v506
          %516 = vst [vmem:[#allocation2 + $0xc] sm:$0x3] %v507
          %517 = vst [vmem:[#allocation2 + $0xe] sm:$0x3] %v508
          %518 = vst [vmem:[#allocation2 + $0x10] sm:$0x3] %v509
        $region52: #{tpu_custom_call.1} parent=47 // pred_fallthru
          _
        %v519 = vld [vmem:[%s338] sm:$0xf]
        %v520 = vld [vmem:[%s338 + $0x4] sm:$0xf]
        %v521 = vld [vmem:[%s338 + $0x8] sm:$0x1]
        %v522 = vld [vmem:[%s338 + $0xc] sm:$0xf]
        %v523 = vld [vmem:[%s338 + $0x10] sm:$0xf]
        %v524 = vld [vmem:[%s338 + $0x14] sm:$0x1]
        %v525 = vld [vmem:[%s338 + $0x18] sm:$0xf]
        %v526 = vld [vmem:[%s338 + $0x1c] sm:$0xf]
        %v527 = vld [vmem:[%s338 + $0x20] sm:$0x1]
        %v528 = vld [vmem:[%s338 + $0x24] sm:$0xf]
        %v529 = vld [vmem:[%s338 + $0x28] sm:$0xf]
        %v530 = vld [vmem:[%s338 + $0x2c] sm:$0x1]
        %v531 = vld [vmem:[%s338 + $0x30] sm:$0xf]
        %v532 = vld [vmem:[%s338 + $0x34] sm:$0xf]
        %v533 = vld [vmem:[%s338 + $0x38] sm:$0x1]
        %v534 = vld [vmem:[%s338 + $0x3c] sm:$0xf]
        %v535 = vld [vmem:[%s338 + $0x40] sm:$0xf]
        %v536 = vld [vmem:[%s338 + $0x44] sm:$0x1]
        %v537 = vld [vmem:[%s338 + $0x48] sm:$0xf]
        %v538 = vld [vmem:[%s338 + $0x4c] sm:$0xf]
        %v539 = vld [vmem:[%s338 + $0x50] sm:$0x1]
        %v540 = vld [vmem:[%s338 + $0x54] sm:$0xf]
        %v541 = vld [vmem:[%s338 + $0x58] sm:$0xf]
        %v542 = vld [vmem:[%s338 + $0x5c] sm:$0x1]
        %v543 = vld [vmem:[%s338 + $0x60] sm:$0xf]
        %v544 = vld [vmem:[%s338 + $0x64] sm:$0xf]
        %v545 = vld [vmem:[%s338 + $0x68] sm:$0x1]
        %v546 = vld [vmem:[%s338 + $0x6c] sm:$0xf]
        %v547 = vld [vmem:[%s338 + $0x70] sm:$0xf]
        %v548 = vld [vmem:[%s338 + $0x74] sm:$0x1]
        %v549 = vld [vmem:[#allocation2] sm:$0x3]
        %vm550 = vsmask.f32 3328
        %vm551 = vsmask.f32 7440
        %vm552 = vmor %vm550, %vm551
        %v554 = vshrl.u32 %v519, 16
        %v556 = vrot.slane %v554, 4
        %v557 = vshll.u32 %v519, 16
        %v559 = vrot.slane %v557, 5
        %v560 = vor.u32 %v556, %v559
        %v561 = vrot.slane %v560, 4
        %v563 = vshll.u32 %v520, 16
        %v565 = vrot.slane %v563, 5
        %v566 = vsel %vm552, %v561, %v565
        %v567 = vshrl.u32 %v520, 16
        %v569 = vrot.slane %v567, 4
        %v570 = vor.u32 %v569, %v565
        %v571 = vrot.slane %v570, 4
        %v573 = vshll.u32 %v521, 16
        %v575 = vrot.slane %v573, 5
        %v576 = vsel %vm552, %v571, %v575
        %v578 = vshrl.u32 %v522, 16
        %v580 = vrot.slane %v578, 4
        %v581 = vshll.u32 %v522, 16
        %v583 = vrot.slane %v581, 5
        %v584 = vor.u32 %v580, %v583
        %v585 = vrot.slane %v584, 4
        %v587 = vshll.u32 %v523, 16
        %v589 = vrot.slane %v587, 5
        %v590 = vsel %vm552, %v585, %v589
        %v591 = vshrl.u32 %v523, 16
        %v593 = vrot.slane %v591, 4
        %v594 = vor.u32 %v593, %v589
        %v595 = vrot.slane %v594, 4
        %v597 = vshll.u32 %v524, 16
        %v599 = vrot.slane %v597, 5
        %v600 = vsel %vm552, %v595, %v599
        %v602 = vshrl.u32 %v525, 16
        %v604 = vrot.slane %v602, 4
        %v605 = vshll.u32 %v525, 16
        %v607 = vrot.slane %v605, 5
        %v608 = vor.u32 %v604, %v607
        %v609 = vrot.slane %v608, 4
        %v611 = vshll.u32 %v526, 16
        %v613 = vrot.slane %v611, 5
        %v614 = vsel %vm552, %v609, %v613
        %v615 = vshrl.u32 %v526, 16
        %v617 = vrot.slane %v615, 4
        %v618 = vor.u32 %v617, %v613
        %v619 = vrot.slane %v618, 4
        %v621 = vshll.u32 %v527, 16
        %v623 = vrot.slane %v621, 5
        %v624 = vsel %vm552, %v619, %v623
        %v626 = vshrl.u32 %v528, 16
        %v628 = vrot.slane %v626, 4
        %v629 = vshll.u32 %v528, 16
        %v631 = vrot.slane %v629, 5
        %v632 = vor.u32 %v628, %v631
        %v633 = vrot.slane %v632, 4
        %v635 = vshll.u32 %v529, 16
        %v637 = vrot.slane %v635, 5
        %v638 = vsel %vm552, %v633, %v637
        %v639 = vshrl.u32 %v529, 16
        %v641 = vrot.slane %v639, 4
        %v642 = vor.u32 %v641, %v637
        %v643 = vrot.slane %v642, 4
        %v645 = vshll.u32 %v530, 16
        %v647 = vrot.slane %v645, 5
        %v648 = vsel %vm552, %v643, %v647
        %v650 = vshrl.u32 %v531, 16
        %v652 = vrot.slane %v650, 4
        %v653 = vshll.u32 %v531, 16
        %v655 = vrot.slane %v653, 5
        %v656 = vor.u32 %v652, %v655
        %v657 = vrot.slane %v656, 4
        %v659 = vshll.u32 %v532, 16
        %v661 = vrot.slane %v659, 5
        %v662 = vsel %vm552, %v657, %v661
        %v663 = vshrl.u32 %v532, 16
        %v665 = vrot.slane %v663, 4
        %v666 = vor.u32 %v665, %v661
        %v667 = vrot.slane %v666, 4
        %v669 = vshll.u32 %v533, 16
        %v671 = vrot.slane %v669, 5
        %v672 = vsel %vm552, %v667, %v671
        %v674 = vshrl.u32 %v534, 16
        %v676 = vrot.slane %v674, 4
        %v677 = vshll.u32 %v534, 16
        %v679 = vrot.slane %v677, 5
        %v680 = vor.u32 %v676, %v679
        %v681 = vrot.slane %v680, 4
        %v683 = vshll.u32 %v535, 16
        %v685 = vrot.slane %v683, 5
        %v686 = vsel %vm552, %v681, %v685
        %v687 = vshrl.u32 %v535, 16
        %v689 = vrot.slane %v687, 4
        %v690 = vor.u32 %v689, %v685
        %v691 = vrot.slane %v690, 4
        %v693 = vshll.u32 %v536, 16
        %v695 = vrot.slane %v693, 5
        %v696 = vsel %vm552, %v691, %v695
        %v698 = vshrl.u32 %v537, 16
        %v700 = vrot.slane %v698, 4
        %v701 = vshll.u32 %v537, 16
        %v703 = vrot.slane %v701, 5
        %v704 = vor.u32 %v700, %v703
        %v705 = vrot.slane %v704, 4
        %v707 = vshll.u32 %v538, 16
        %v709 = vrot.slane %v707, 5
        %v710 = vsel %vm552, %v705, %v709
        %v711 = vshrl.u32 %v538, 16
        %v713 = vrot.slane %v711, 4
        %v714 = vor.u32 %v713, %v709
        %v715 = vrot.slane %v714, 4
        %v717 = vshll.u32 %v539, 16
        %v719 = vrot.slane %v717, 5
        %v720 = vsel %vm552, %v715, %v719
        %v722 = vshrl.u32 %v540, 16
        %v724 = vrot.slane %v722, 4
        %v725 = vshll.u32 %v540, 16
        %v727 = vrot.slane %v725, 5
        %v728 = vor.u32 %v724, %v727
        %v729 = vrot.slane %v728, 4
        %v731 = vshll.u32 %v541, 16
        %v733 = vrot.slane %v731, 5
        %v734 = vsel %vm552, %v729, %v733
        %v735 = vshrl.u32 %v541, 16
        %v737 = vrot.slane %v735, 4
        %v738 = vor.u32 %v737, %v733
        %v739 = vrot.slane %v738, 4
        %v741 = vshll.u32 %v542, 16
        %v743 = vrot.slane %v741, 5
        %v744 = vsel %vm552, %v739, %v743
        %s745 = scalar_lea.vmem [#allocation2], 2
        %v746 = vld [vmem:[%s745] sm:$0x3]
        %v747 = vunpack.c.l.b16 %v566
        %v748 = vunpack.c.l.b16 %v576
        %v749 = vunpack.c.l.b16 %v590
        %v750 = vunpack.c.l.b16 %v600
        %v751 = vunpack.c.l.b16 %v614
        %v752 = vunpack.c.l.b16 %v624
        %v753 = vunpack.c.l.b16 %v638
        %v754 = vunpack.c.l.b16 %v648
        %v755 = vunpack.c.l.b16 %v662
        %v756 = vunpack.c.l.b16 %v672
        %v757 = vunpack.c.l.b16 %v686
        %v758 = vunpack.c.l.b16 %v696
        %v759 = vunpack.c.l.b16 %v710
        %v760 = vunpack.c.l.b16 %v720
        %v761 = vunpack.c.l.b16 %v734
        %v762 = vunpack.c.l.b16 %v744
        %v763 = vpack.c.b16 %v748, %v747
        %v764 = vpack.c.b16 %v750, %v749
        %v765 = vpack.c.b16 %v752, %v751
        %v766 = vpack.c.b16 %v754, %v753
        %v767 = vpack.c.b16 %v756, %v755
        %v768 = vpack.c.b16 %v758, %v757
        %v769 = vpack.c.b16 %v760, %v759
        %v770 = vpack.c.b16 %v762, %v761
        %vm771 = vcmask 31744
        %v773 = vsel %vm771, %v763, 0
        %v776 = vsel %vm771, %v764, 0
        %v779 = vsel %vm771, %v765, 0
        %v782 = vsel %vm771, %v766, 0
        %v785 = vsel %vm771, %v767, 0
        %v788 = vsel %vm771, %v768, 0
        %v791 = vsel %vm771, %v769, 0
        %v794 = vsel %vm771, %v770, 0
        %vm796 = vcmask 1041408
        %v798 = vsel %vm796, %v746, 0
        %800 = vmatprep.subr.bf16.mxu0 0
        %801 = vmatpush1.bf16.msra.mxu0 0
        %802 = vmatprep.subr.bf16.mxu0 0
        %803 = vmatpush1.bf16.msra.mxu0 0
        %804 = vmatprep.subr.bf16.mxu0 0
        %805 = vmatpush1.bf16.msra.mxu0 0
        %806 = vmatprep.subr.bf16.mxu0 0
        %807 = vmatpush1.bf16.msra.mxu0 0
        %808 = vmatprep.subr.bf16.mxu0 0
        %809 = vmatpush1.bf16.msra.mxu0 0
        %810 = vmatprep.subr.bf16.mxu0 0
        %811 = vmatpush1.bf16.msra.mxu0 0
        %812 = vmatprep.subr.bf16.mxu0 0
        %813 = vmatpush1.bf16.msra.mxu0 0
        %814 = vmatprep.subr.bf16.mxu0 0
        %815 = vmatpush1.bf16.msra.mxu0 %v798
        %816 = vmatprep.subr.bf16.mxu0 0
        %817 = vmatpush2.bf16.msra.mxu0 0
        %818 = vmatprep.subr.bf16.mxu0 0
        %819 = vmatpush2.bf16.msra.mxu0 0
        %820 = vmatprep.subr.bf16.mxu0 0
        %821 = vmatpush2.bf16.msra.mxu0 0
        %822 = vmatprep.subr.bf16.mxu0 0
        %823 = vmatpush2.bf16.msra.mxu0 0
        %824 = vmatprep.subr.bf16.mxu0 0
        %825 = vmatpush2.bf16.msra.mxu0 0
        %826 = vmatprep.subr.bf16.mxu0 0
        %827 = vmatpush2.bf16.msra.mxu0 0
        %828 = vmatprep.subr.bf16.mxu0 0
        %829 = vmatpush2.bf16.msra.mxu0 0
        %830 = vmatprep.subr.bf16.mxu0 0
        %831 = vmatpush2.bf16.msra.mxu0 0
        %832 = vmatprep.mubr.bf16.mxu0 0
        %833 = vmatmul.mubr.bf16.gmra.mxu0 %v773
        %v834 = vpop.f32.mrf.mxu0
        %v835 = vadd.f32 0.0, %v834
        %v836 = vpop.f32.mrf.mxu0
        %v837 = vpop.f32.mrf.mxu0
        %v838 = vadd.f32 0.0, %v837
        %v839 = vpop.f32.mrf.mxu0
        %840 = vmatprep.mubr.bf16.mxu0 0
        %841 = vmatmul.mubr.bf16.gmra.mxu0 %v776
        %v842 = vpop.f32.mrf.mxu0
        %v843 = vadd.f32 0.0, %v842
        %v844 = vpop.f32.mrf.mxu0
        %v845 = vpop.f32.mrf.mxu0
        %v846 = vadd.f32 0.0, %v845
        %v847 = vpop.f32.mrf.mxu0
        %848 = vmatprep.mubr.bf16.mxu0 0
        %849 = vmatmul.mubr.bf16.gmra.mxu0 %v779
        %v850 = vpop.f32.mrf.mxu0
        %v851 = vadd.f32 0.0, %v850
        %v852 = vpop.f32.mrf.mxu0
        %v853 = vpop.f32.mrf.mxu0
        %v854 = vadd.f32 0.0, %v853
        %v855 = vpop.f32.mrf.mxu0
        %856 = vmatprep.mubr.bf16.mxu0 0
        %857 = vmatmul.mubr.bf16.gmra.mxu0 %v782
        %v858 = vpop.f32.mrf.mxu0
        %v859 = vadd.f32 0.0, %v858
        %v860 = vpop.f32.mrf.mxu0
        %v861 = vpop.f32.mrf.mxu0
        %v862 = vadd.f32 0.0, %v861
        %v863 = vpop.f32.mrf.mxu0
        %864 = vmatprep.mubr.bf16.mxu0 0
        %865 = vmatmul.mubr.bf16.gmra.mxu0 %v785
        %v866 = vpop.f32.mrf.mxu0
        %v867 = vadd.f32 0.0, %v866
        %v868 = vpop.f32.mrf.mxu0
        %v869 = vpop.f32.mrf.mxu0
        %v870 = vadd.f32 0.0, %v869
        %v871 = vpop.f32.mrf.mxu0
        %872 = vmatprep.mubr.bf16.mxu0 0
        %873 = vmatmul.mubr.bf16.gmra.mxu0 %v788
        %v874 = vpop.f32.mrf.mxu0
        %v875 = vadd.f32 0.0, %v874
        %v876 = vpop.f32.mrf.mxu0
        %v877 = vpop.f32.mrf.mxu0
        %v878 = vadd.f32 0.0, %v877
        %v879 = vpop.f32.mrf.mxu0
        %880 = vmatprep.mubr.bf16.mxu0 0
        %881 = vmatmul.mubr.bf16.gmra.mxu0 %v791
        %v882 = vpop.f32.mrf.mxu0
        %v883 = vadd.f32 0.0, %v882
        %v884 = vpop.f32.mrf.mxu0
        %v885 = vpop.f32.mrf.mxu0
        %v886 = vadd.f32 0.0, %v885
        %v887 = vpop.f32.mrf.mxu0
        %888 = vmatprep.mubr.bf16.mxu0 0
        %889 = vmatmul.mubr.bf16.gmra.mxu0 %v794
        %v890 = vpop.f32.mrf.mxu0
        %v891 = vadd.f32 0.0, %v890
        %v892 = vpop.f32.mrf.mxu0
        %v893 = vpop.f32.mrf.mxu0
        %v894 = vadd.f32 0.0, %v893
        %v895 = vpop.f32.mrf.mxu0
        %896 = vdwg.mxu0
        %v913 = vunpack.c.l.b16 %v519
        %v914 = vunpack.c.l.b16 %v520
        %v915 = vunpack.c.l.b16 %v522
        %v916 = vunpack.c.l.b16 %v523
        %v917 = vunpack.c.l.b16 %v525
        %v918 = vunpack.c.l.b16 %v526
        %v919 = vunpack.c.l.b16 %v528
        %v920 = vunpack.c.l.b16 %v529
        %v921 = vunpack.c.l.b16 %v531
        %v922 = vunpack.c.l.b16 %v532
        %v923 = vunpack.c.l.b16 %v534
        %v924 = vunpack.c.l.b16 %v535
        %v925 = vunpack.c.l.b16 %v537
        %v926 = vunpack.c.l.b16 %v538
        %v927 = vunpack.c.l.b16 %v540
        %v928 = vunpack.c.l.b16 %v541
        %v929 = vpack.c.b16 %v914, %v913
        %v930 = vpack.c.b16 %v916, %v915
        %v931 = vpack.c.b16 %v918, %v917
        %v932 = vpack.c.b16 %v920, %v919
        %v933 = vpack.c.b16 %v922, %v921
        %v934 = vpack.c.b16 %v924, %v923
        %v935 = vpack.c.b16 %v926, %v925
        %v936 = vpack.c.b16 %v928, %v927
        %v938 = vsel %vm771, %v929, 0
        %v941 = vsel %vm771, %v930, 0
        %v944 = vsel %vm771, %v931, 0
        %v947 = vsel %vm771, %v932, 0
        %v950 = vsel %vm771, %v933, 0
        %v953 = vsel %vm771, %v934, 0
        %v956 = vsel %vm771, %v935, 0
        %v959 = vsel %vm771, %v936, 0
        %v962 = vsel %vm796, %v549, 0
        %964 = vmatprep.subr.bf16.mxu0 0
        %965 = vmatpush1.bf16.msra.mxu0 0
        %966 = vmatprep.subr.bf16.mxu0 0
        %967 = vmatpush1.bf16.msra.mxu0 0
        %968 = vmatprep.subr.bf16.mxu0 0
        %969 = vmatpush1.bf16.msra.mxu0 0
        %970 = vmatprep.subr.bf16.mxu0 0
        %971 = vmatpush1.bf16.msra.mxu0 0
        %972 = vmatprep.subr.bf16.mxu0 0
        %973 = vmatpush1.bf16.msra.mxu0 0
        %974 = vmatprep.subr.bf16.mxu0 0
        %975 = vmatpush1.bf16.msra.mxu0 0
        %976 = vmatprep.subr.bf16.mxu0 0
        %977 = vmatpush1.bf16.msra.mxu0 0
        %978 = vmatprep.subr.bf16.mxu0 0
        %979 = vmatpush1.bf16.msra.mxu0 %v962
        %980 = vmatprep.subr.bf16.mxu0 0
        %981 = vmatpush2.bf16.msra.mxu0 0
        %982 = vmatprep.subr.bf16.mxu0 0
        %983 = vmatpush2.bf16.msra.mxu0 0
        %984 = vmatprep.subr.bf16.mxu0 0
        %985 = vmatpush2.bf16.msra.mxu0 0
        %986 = vmatprep.subr.bf16.mxu0 0
        %987 = vmatpush2.bf16.msra.mxu0 0
        %988 = vmatprep.subr.bf16.mxu0 0
        %989 = vmatpush2.bf16.msra.mxu0 0
        %990 = vmatprep.subr.bf16.mxu0 0
        %991 = vmatpush2.bf16.msra.mxu0 0
        %992 = vmatprep.subr.bf16.mxu0 0
        %993 = vmatpush2.bf16.msra.mxu0 0
        %994 = vmatprep.subr.bf16.mxu0 0
        %995 = vmatpush2.bf16.msra.mxu0 0
        %996 = vmatprep.mubr.bf16.mxu0 0
        %997 = vmatmul.mubr.bf16.gmra.mxu0 %v938
        %v998 = vpop.f32.mrf.mxu0
        %v999 = vadd.f32 %v835, %v998
        %v1000 = vpop.f32.mrf.mxu0
        %v1001 = vpop.f32.mrf.mxu0
        %v1002 = vadd.f32 %v838, %v1001
        %v1003 = vpop.f32.mrf.mxu0
        %1004 = vmatprep.mubr.bf16.mxu0 0
        %1005 = vmatmul.mubr.bf16.gmra.mxu0 %v941
        %v1006 = vpop.f32.mrf.mxu0
        %v1007 = vadd.f32 %v843, %v1006
        %v1008 = vpop.f32.mrf.mxu0
        %v1009 = vpop.f32.mrf.mxu0
        %v1010 = vadd.f32 %v846, %v1009
        %v1011 = vpop.f32.mrf.mxu0
        %1012 = vmatprep.mubr.bf16.mxu0 0
        %1013 = vmatmul.mubr.bf16.gmra.mxu0 %v944
        %v1014 = vpop.f32.mrf.mxu0
        %v1015 = vadd.f32 %v851, %v1014
        %v1016 = vpop.f32.mrf.mxu0
        %v1017 = vpop.f32.mrf.mxu0
        %v1018 = vadd.f32 %v854, %v1017
        %v1019 = vpop.f32.mrf.mxu0
        %1020 = vmatprep.mubr.bf16.mxu0 0
        %1021 = vmatmul.mubr.bf16.gmra.mxu0 %v947
        %v1022 = vpop.f32.mrf.mxu0
        %v1023 = vadd.f32 %v859, %v1022
        %v1024 = vpop.f32.mrf.mxu0
        %v1025 = vpop.f32.mrf.mxu0
        %v1026 = vadd.f32 %v862, %v1025
        %v1027 = vpop.f32.mrf.mxu0
        %1028 = vmatprep.mubr.bf16.mxu0 0
        %1029 = vmatmul.mubr.bf16.gmra.mxu0 %v950
        %v1030 = vpop.f32.mrf.mxu0
        %v1031 = vadd.f32 %v867, %v1030
        %v1032 = vpop.f32.mrf.mxu0
        %v1033 = vpop.f32.mrf.mxu0
        %v1034 = vadd.f32 %v870, %v1033
        %v1035 = vpop.f32.mrf.mxu0
        %1036 = vmatprep.mubr.bf16.mxu0 0
        %1037 = vmatmul.mubr.bf16.gmra.mxu0 %v953
        %v1038 = vpop.f32.mrf.mxu0
        %v1039 = vadd.f32 %v875, %v1038
        %v1040 = vpop.f32.mrf.mxu0
        %v1041 = vpop.f32.mrf.mxu0
        %v1042 = vadd.f32 %v878, %v1041
        %v1043 = vpop.f32.mrf.mxu0
        %1044 = vmatprep.mubr.bf16.mxu0 0
        %1045 = vmatmul.mubr.bf16.gmra.mxu0 %v956
        %v1046 = vpop.f32.mrf.mxu0
        %v1047 = vadd.f32 %v883, %v1046
        %v1048 = vpop.f32.mrf.mxu0
        %v1049 = vpop.f32.mrf.mxu0
        %v1050 = vadd.f32 %v886, %v1049
        %v1051 = vpop.f32.mrf.mxu0
        %1052 = vmatprep.mubr.bf16.mxu0 0
        %1053 = vmatmul.mubr.bf16.gmra.mxu0 %v959
        %v1054 = vpop.f32.mrf.mxu0
        %v1055 = vadd.f32 %v891, %v1054
        %v1056 = vpop.f32.mrf.mxu0
        %v1057 = vpop.f32.mrf.mxu0
        %v1058 = vadd.f32 %v894, %v1057
        %v1059 = vpop.f32.mrf.mxu0
        %1060 = vdwg.mxu0
        %vm1069 = vcmask 1042432
        %vm1070 = vcmask 1046532
        %vm1071 = vmor %vm1069, %vm1070
        %v1072 = vrot.slane %v519, 5
        %v1073 = vrot.slane %v1072, 4
        %v1074 = vrot.slane %v520, 5
        %v1075 = vsel %vm1071, %v1073, %v1074
        %v1076 = vrot.slane %v1074, 4
        %v1077 = vrot.slane %v521, 5
        %v1078 = vsel %vm1071, %v1076, %v1077
        %v1079 = vrot.slane %v522, 5
        %v1080 = vrot.slane %v1079, 4
        %v1081 = vrot.slane %v523, 5
        %v1082 = vsel %vm1071, %v1080, %v1081
        %v1083 = vrot.slane %v1081, 4
        %v1084 = vrot.slane %v524, 5
        %v1085 = vsel %vm1071, %v1083, %v1084
        %v1086 = vrot.slane %v525, 5
        %v1087 = vrot.slane %v1086, 4
        %v1088 = vrot.slane %v526, 5
        %v1089 = vsel %vm1071, %v1087, %v1088
        %v1090 = vrot.slane %v1088, 4
        %v1091 = vrot.slane %v527, 5
        %v1092 = vsel %vm1071, %v1090, %v1091
        %v1093 = vrot.slane %v528, 5
        %v1094 = vrot.slane %v1093, 4
        %v1095 = vrot.slane %v529, 5
        %v1096 = vsel %vm1071, %v1094, %v1095
        %v1097 = vrot.slane %v1095, 4
        %v1098 = vrot.slane %v530, 5
        %v1099 = vsel %vm1071, %v1097, %v1098
        %v1100 = vrot.slane %v531, 5
        %v1101 = vrot.slane %v1100, 4
        %v1102 = vrot.slane %v532, 5
        %v1103 = vsel %vm1071, %v1101, %v1102
        %v1104 = vrot.slane %v1102, 4
        %v1105 = vrot.slane %v533, 5
        %v1106 = vsel %vm1071, %v1104, %v1105
        %v1107 = vrot.slane %v534, 5
        %v1108 = vrot.slane %v1107, 4
        %v1109 = vrot.slane %v535, 5
        %v1110 = vsel %vm1071, %v1108, %v1109
        %v1111 = vrot.slane %v1109, 4
        %v1112 = vrot.slane %v536, 5
        %v1113 = vsel %vm1071, %v1111, %v1112
        %v1114 = vrot.slane %v537, 5
        %v1115 = vrot.slane %v1114, 4
        %v1116 = vrot.slane %v538, 5
        %v1117 = vsel %vm1071, %v1115, %v1116
        %v1118 = vrot.slane %v1116, 4
        %v1119 = vrot.slane %v539, 5
        %v1120 = vsel %vm1071, %v1118, %v1119
        %v1121 = vrot.slane %v540, 5
        %v1122 = vrot.slane %v1121, 4
        %v1123 = vrot.slane %v541, 5
        %v1124 = vsel %vm1071, %v1122, %v1123
        %v1125 = vrot.slane %v1123, 4
        %v1126 = vrot.slane %v542, 5
        %v1127 = vsel %vm1071, %v1125, %v1126
        %s1128 = scalar_lea.vmem [#allocation2], 4
        %v1129 = vld [vmem:[%s1128] sm:$0x3]
        %v1130 = vunpack.c.l.b16 %v1075
        %v1131 = vunpack.c.l.b16 %v1078
        %v1132 = vunpack.c.l.b16 %v1082
        %v1133 = vunpack.c.l.b16 %v1085
        %v1134 = vunpack.c.l.b16 %v1089
        %v1135 = vunpack.c.l.b16 %v1092
        %v1136 = vunpack.c.l.b16 %v1096
        %v1137 = vunpack.c.l.b16 %v1099
        %v1138 = vunpack.c.l.b16 %v1103
        %v1139 = vunpack.c.l.b16 %v1106
        %v1140 = vunpack.c.l.b16 %v1110
        %v1141 = vunpack.c.l.b16 %v1113
        %v1142 = vunpack.c.l.b16 %v1117
        %v1143 = vunpack.c.l.b16 %v1120
        %v1144 = vunpack.c.l.b16 %v1124
        %v1145 = vunpack.c.l.b16 %v1127
        %v1146 = vpack.c.b16 %v1131, %v1130
        %v1147 = vpack.c.b16 %v1133, %v1132
        %v1148 = vpack.c.b16 %v1135, %v1134
        %v1149 = vpack.c.b16 %v1137, %v1136
        %v1150 = vpack.c.b16 %v1139, %v1138
        %v1151 = vpack.c.b16 %v1141, %v1140
        %v1152 = vpack.c.b16 %v1143, %v1142
        %v1153 = vpack.c.b16 %v1145, %v1144
        %v1155 = vsel %vm771, %v1146, 0
        %v1158 = vsel %vm771, %v1147, 0
        %v1161 = vsel %vm771, %v1148, 0
        %v1164 = vsel %vm771, %v1149, 0
        %v1167 = vsel %vm771, %v1150, 0
        %v1170 = vsel %vm771, %v1151, 0
        %v1173 = vsel %vm771, %v1152, 0
        %v1176 = vsel %vm771, %v1153, 0
        %v1179 = vsel %vm796, %v1129, 0
        %1181 = vmatprep.subr.bf16.mxu0 0
        %1182 = vmatpush1.bf16.msra.mxu0 0
        %1183 = vmatprep.subr.bf16.mxu0 0
        %1184 = vmatpush1.bf16.msra.mxu0 0
        %1185 = vmatprep.subr.bf16.mxu0 0
        %1186 = vmatpush1.bf16.msra.mxu0 0
        %1187 = vmatprep.subr.bf16.mxu0 0
        %1188 = vmatpush1.bf16.msra.mxu0 0
        %1189 = vmatprep.subr.bf16.mxu0 0
        %1190 = vmatpush1.bf16.msra.mxu0 0
        %1191 = vmatprep.subr.bf16.mxu0 0
        %1192 = vmatpush1.bf16.msra.mxu0 0
        %1193 = vmatprep.subr.bf16.mxu0 0
        %1194 = vmatpush1.bf16.msra.mxu0 0
        %1195 = vmatprep.subr.bf16.mxu0 0
        %1196 = vmatpush1.bf16.msra.mxu0 %v1179
        %1197 = vmatprep.subr.bf16.mxu0 0
        %1198 = vmatpush2.bf16.msra.mxu0 0
        %1199 = vmatprep.subr.bf16.mxu0 0
        %1200 = vmatpush2.bf16.msra.mxu0 0
        %1201 = vmatprep.subr.bf16.mxu0 0
        %1202 = vmatpush2.bf16.msra.mxu0 0
        %1203 = vmatprep.subr.bf16.mxu0 0
        %1204 = vmatpush2.bf16.msra.mxu0 0
        %1205 = vmatprep.subr.bf16.mxu0 0
        %1206 = vmatpush2.bf16.msra.mxu0 0
        %1207 = vmatprep.subr.bf16.mxu0 0
        %1208 = vmatpush2.bf16.msra.mxu0 0
        %1209 = vmatprep.subr.bf16.mxu0 0
        %1210 = vmatpush2.bf16.msra.mxu0 0
        %1211 = vmatprep.subr.bf16.mxu0 0
        %1212 = vmatpush2.bf16.msra.mxu0 0
        %1213 = vmatprep.mubr.bf16.mxu0 0
        %1214 = vmatmul.mubr.bf16.gmra.mxu0 %v1155
        %v1215 = vpop.f32.mrf.mxu0
        %v1216 = vadd.f32 0.0, %v1215
        %v1217 = vpop.f32.mrf.mxu0
        %v1218 = vpop.f32.mrf.mxu0
        %v1219 = vadd.f32 0.0, %v1218
        %v1220 = vpop.f32.mrf.mxu0
        %1221 = vmatprep.mubr.bf16.mxu0 0
        %1222 = vmatmul.mubr.bf16.gmra.mxu0 %v1158
        %v1223 = vpop.f32.mrf.mxu0
        %v1224 = vadd.f32 0.0, %v1223
        %v1225 = vpop.f32.mrf.mxu0
        %v1226 = vpop.f32.mrf.mxu0
        %v1227 = vadd.f32 0.0, %v1226
        %v1228 = vpop.f32.mrf.mxu0
        %1229 = vmatprep.mubr.bf16.mxu0 0
        %1230 = vmatmul.mubr.bf16.gmra.mxu0 %v1161
        %v1231 = vpop.f32.mrf.mxu0
        %v1232 = vadd.f32 0.0, %v1231
        %v1233 = vpop.f32.mrf.mxu0
        %v1234 = vpop.f32.mrf.mxu0
        %v1235 = vadd.f32 0.0, %v1234
        %v1236 = vpop.f32.mrf.mxu0
        %1237 = vmatprep.mubr.bf16.mxu0 0
        %1238 = vmatmul.mubr.bf16.gmra.mxu0 %v1164
        %v1239 = vpop.f32.mrf.mxu0
        %v1240 = vadd.f32 0.0, %v1239
        %v1241 = vpop.f32.mrf.mxu0
        %v1242 = vpop.f32.mrf.mxu0
        %v1243 = vadd.f32 0.0, %v1242
        %v1244 = vpop.f32.mrf.mxu0
        %1245 = vmatprep.mubr.bf16.mxu0 0
        %1246 = vmatmul.mubr.bf16.gmra.mxu0 %v1167
        %v1247 = vpop.f32.mrf.mxu0
        %v1248 = vadd.f32 0.0, %v1247
        %v1249 = vpop.f32.mrf.mxu0
        %v1250 = vpop.f32.mrf.mxu0
        %v1251 = vadd.f32 0.0, %v1250
        %v1252 = vpop.f32.mrf.mxu0
        %1253 = vmatprep.mubr.bf16.mxu0 0
        %1254 = vmatmul.mubr.bf16.gmra.mxu0 %v1170
        %v1255 = vpop.f32.mrf.mxu0
        %v1256 = vadd.f32 0.0, %v1255
        %v1257 = vpop.f32.mrf.mxu0
        %v1258 = vpop.f32.mrf.mxu0
        %v1259 = vadd.f32 0.0, %v1258
        %v1260 = vpop.f32.mrf.mxu0
        %1261 = vmatprep.mubr.bf16.mxu0 0
        %1262 = vmatmul.mubr.bf16.gmra.mxu0 %v1173
        %v1263 = vpop.f32.mrf.mxu0
        %v1264 = vadd.f32 0.0, %v1263
        %v1265 = vpop.f32.mrf.mxu0
        %v1266 = vpop.f32.mrf.mxu0
        %v1267 = vadd.f32 0.0, %v1266
        %v1268 = vpop.f32.mrf.mxu0
        %1269 = vmatprep.mubr.bf16.mxu0 0
        %1270 = vmatmul.mubr.bf16.gmra.mxu0 %v1176
        %v1271 = vpop.f32.mrf.mxu0
        %v1272 = vadd.f32 0.0, %v1271
        %v1273 = vpop.f32.mrf.mxu0
        %v1274 = vpop.f32.mrf.mxu0
        %v1275 = vadd.f32 0.0, %v1274
        %v1276 = vpop.f32.mrf.mxu0
        %1277 = vdwg.mxu0
        %v1278 = vadd.f32 %v999, %v1216
        %v1279 = vadd.f32 %v1002, %v1219
        %v1280 = vadd.f32 %v1007, %v1224
        %v1281 = vadd.f32 %v1010, %v1227
        %v1282 = vadd.f32 %v1015, %v1232
        %v1283 = vadd.f32 %v1018, %v1235
        %v1284 = vadd.f32 %v1023, %v1240
        %v1285 = vadd.f32 %v1026, %v1243
        %v1286 = vadd.f32 %v1031, %v1248
        %v1287 = vadd.f32 %v1034, %v1251
        %v1288 = vadd.f32 %v1039, %v1256
        %v1289 = vadd.f32 %v1042, %v1259
        %v1290 = vadd.f32 %v1047, %v1264
        %v1291 = vadd.f32 %v1050, %v1267
        %v1292 = vadd.f32 %v1055, %v1272
        %v1293 = vadd.f32 %v1058, %v1275
        %s1294 = scalar_lea.vmem [#allocation2], 6
        %v1295 = vld [vmem:[%s1294] sm:$0x3]
        %v1298 = vunpack.c.l.b16 %v543
        %v1299 = vunpack.c.l.b16 %v544
        %v1300 = vpack.c.b16 %v1299, %v1298
        %v1302 = vsel %vm771, %v1300, 0
        %v1305 = vsel %vm796, %v1295, 0
        %1307 = vmatprep.subr.bf16.mxu0 0
        %1308 = vmatpush1.bf16.msra.mxu0 0
        %1309 = vmatprep.subr.bf16.mxu0 0
        %1310 = vmatpush1.bf16.msra.mxu0 0
        %1311 = vmatprep.subr.bf16.mxu0 0
        %1312 = vmatpush1.bf16.msra.mxu0 0
        %1313 = vmatprep.subr.bf16.mxu0 0
        %1314 = vmatpush1.bf16.msra.mxu0 0
        %1315 = vmatprep.subr.bf16.mxu0 0
        %1316 = vmatpush1.bf16.msra.mxu0 0
        %1317 = vmatprep.subr.bf16.mxu0 0
        %1318 = vmatpush1.bf16.msra.mxu0 0
        %1319 = vmatprep.subr.bf16.mxu0 0
        %1320 = vmatpush1.bf16.msra.mxu0 0
        %1321 = vmatprep.subr.bf16.mxu0 0
        %1322 = vmatpush1.bf16.msra.mxu0 %v1305
        %1323 = vmatprep.subr.bf16.mxu0 0
        %1324 = vmatpush2.bf16.msra.mxu0 0
        %1325 = vmatprep.subr.bf16.mxu0 0
        %1326 = vmatpush2.bf16.msra.mxu0 0
        %1327 = vmatprep.subr.bf16.mxu0 0
        %1328 = vmatpush2.bf16.msra.mxu0 0
        %1329 = vmatprep.subr.bf16.mxu0 0
        %1330 = vmatpush2.bf16.msra.mxu0 0
        %1331 = vmatprep.subr.bf16.mxu0 0
        %1332 = vmatpush2.bf16.msra.mxu0 0
        %1333 = vmatprep.subr.bf16.mxu0 0
        %1334 = vmatpush2.bf16.msra.mxu0 0
        %1335 = vmatprep.subr.bf16.mxu0 0
        %1336 = vmatpush2.bf16.msra.mxu0 0
        %1337 = vmatprep.subr.bf16.mxu0 0
        %1338 = vmatpush2.bf16.msra.mxu0 0
        %1339 = vmatprep.mubr.bf16.mxu0 0
        %1340 = vmatmul.mubr.bf16.gmra.mxu0 %v941
        %v1341 = vpop.f32.mrf.mxu0
        %v1342 = vadd.f32 0.0, %v1341
        %v1343 = vpop.f32.mrf.mxu0
        %v1344 = vpop.f32.mrf.mxu0
        %v1345 = vadd.f32 0.0, %v1344
        %v1346 = vpop.f32.mrf.mxu0
        %1347 = vmatprep.mubr.bf16.mxu0 0
        %1348 = vmatmul.mubr.bf16.gmra.mxu0 %v944
        %v1349 = vpop.f32.mrf.mxu0
        %v1350 = vadd.f32 0.0, %v1349
        %v1351 = vpop.f32.mrf.mxu0
        %v1352 = vpop.f32.mrf.mxu0
        %v1353 = vadd.f32 0.0, %v1352
        %v1354 = vpop.f32.mrf.mxu0
        %1355 = vmatprep.mubr.bf16.mxu0 0
        %1356 = vmatmul.mubr.bf16.gmra.mxu0 %v947
        %v1357 = vpop.f32.mrf.mxu0
        %v1358 = vadd.f32 0.0, %v1357
        %v1359 = vpop.f32.mrf.mxu0
        %v1360 = vpop.f32.mrf.mxu0
        %v1361 = vadd.f32 0.0, %v1360
        %v1362 = vpop.f32.mrf.mxu0
        %1363 = vmatprep.mubr.bf16.mxu0 0
        %1364 = vmatmul.mubr.bf16.gmra.mxu0 %v950
        %v1365 = vpop.f32.mrf.mxu0
        %v1366 = vadd.f32 0.0, %v1365
        %v1367 = vpop.f32.mrf.mxu0
        %v1368 = vpop.f32.mrf.mxu0
        %v1369 = vadd.f32 0.0, %v1368
        %v1370 = vpop.f32.mrf.mxu0
        %1371 = vmatprep.mubr.bf16.mxu0 0
        %1372 = vmatmul.mubr.bf16.gmra.mxu0 %v953
        %v1373 = vpop.f32.mrf.mxu0
        %v1374 = vadd.f32 0.0, %v1373
        %v1375 = vpop.f32.mrf.mxu0
        %v1376 = vpop.f32.mrf.mxu0
        %v1377 = vadd.f32 0.0, %v1376
        %v1378 = vpop.f32.mrf.mxu0
        %1379 = vmatprep.mubr.bf16.mxu0 0
        %1380 = vmatmul.mubr.bf16.gmra.mxu0 %v956
        %v1381 = vpop.f32.mrf.mxu0
        %v1382 = vadd.f32 0.0, %v1381
        %v1383 = vpop.f32.mrf.mxu0
        %v1384 = vpop.f32.mrf.mxu0
        %v1385 = vadd.f32 0.0, %v1384
        %v1386 = vpop.f32.mrf.mxu0
        %1387 = vmatprep.mubr.bf16.mxu0 0
        %1388 = vmatmul.mubr.bf16.gmra.mxu0 %v959
        %v1389 = vpop.f32.mrf.mxu0
        %v1390 = vadd.f32 0.0, %v1389
        %v1391 = vpop.f32.mrf.mxu0
        %v1392 = vpop.f32.mrf.mxu0
        %v1393 = vadd.f32 0.0, %v1392
        %v1394 = vpop.f32.mrf.mxu0
        %1395 = vmatprep.mubr.bf16.mxu0 0
        %1396 = vmatmul.mubr.bf16.gmra.mxu0 %v1302
        %v1397 = vpop.f32.mrf.mxu0
        %v1398 = vadd.f32 0.0, %v1397
        %v1399 = vpop.f32.mrf.mxu0
        %v1400 = vpop.f32.mrf.mxu0
        %v1401 = vadd.f32 0.0, %v1400
        %v1402 = vpop.f32.mrf.mxu0
        %1403 = vdwg.mxu0
        %v1404 = vadd.f32 %v1278, %v1342
        %v1405 = vadd.f32 %v1279, %v1345
        %v1406 = vadd.f32 %v1280, %v1350
        %v1407 = vadd.f32 %v1281, %v1353
        %v1408 = vadd.f32 %v1282, %v1358
        %v1409 = vadd.f32 %v1283, %v1361
        %v1410 = vadd.f32 %v1284, %v1366
        %v1411 = vadd.f32 %v1285, %v1369
        %v1412 = vadd.f32 %v1286, %v1374
        %v1413 = vadd.f32 %v1287, %v1377
        %v1414 = vadd.f32 %v1288, %v1382
        %v1415 = vadd.f32 %v1289, %v1385
        %v1416 = vadd.f32 %v1290, %v1390
        %v1417 = vadd.f32 %v1291, %v1393
        %v1418 = vadd.f32 %v1292, %v1398
        %v1419 = vadd.f32 %v1293, %v1401
        %v1421 = vshrl.u32 %v543, 16
        %v1423 = vrot.slane %v1421, 4
        %v1424 = vshll.u32 %v543, 16
        %v1426 = vrot.slane %v1424, 5
        %v1427 = vor.u32 %v1423, %v1426
        %v1428 = vrot.slane %v1427, 4
        %v1430 = vshll.u32 %v544, 16
        %v1432 = vrot.slane %v1430, 5
        %v1433 = vsel %vm552, %v1428, %v1432
        %v1434 = vshrl.u32 %v544, 16
        %v1436 = vrot.slane %v1434, 4
        %v1437 = vor.u32 %v1436, %v1432
        %v1438 = vrot.slane %v1437, 4
        %v1440 = vshll.u32 %v545, 16
        %v1442 = vrot.slane %v1440, 5
        %v1443 = vsel %vm552, %v1438, %v1442
        %s1444 = scalar_lea.vmem [#allocation2], 8
        %v1445 = vld [vmem:[%s1444] sm:$0x3]
        %v1446 = vunpack.c.l.b16 %v1433
        %v1447 = vunpack.c.l.b16 %v1443
        %v1448 = vpack.c.b16 %v1447, %v1446
        %v1450 = vsel %vm771, %v1448, 0
        %v1453 = vsel %vm796, %v1445, 0
        %1455 = vmatprep.subr.bf16.mxu0 0
        %1456 = vmatpush1.bf16.msra.mxu0 0
        %1457 = vmatprep.subr.bf16.mxu0 0
        %1458 = vmatpush1.bf16.msra.mxu0 0
        %1459 = vmatprep.subr.bf16.mxu0 0
        %1460 = vmatpush1.bf16.msra.mxu0 0
        %1461 = vmatprep.subr.bf16.mxu0 0
        %1462 = vmatpush1.bf16.msra.mxu0 0
        %1463 = vmatprep.subr.bf16.mxu0 0
        %1464 = vmatpush1.bf16.msra.mxu0 0
        %1465 = vmatprep.subr.bf16.mxu0 0
        %1466 = vmatpush1.bf16.msra.mxu0 0
        %1467 = vmatprep.subr.bf16.mxu0 0
        %1468 = vmatpush1.bf16.msra.mxu0 0
        %1469 = vmatprep.subr.bf16.mxu0 0
        %1470 = vmatpush1.bf16.msra.mxu0 %v1453
        %1471 = vmatprep.subr.bf16.mxu0 0
        %1472 = vmatpush2.bf16.msra.mxu0 0
        %1473 = vmatprep.subr.bf16.mxu0 0
        %1474 = vmatpush2.bf16.msra.mxu0 0
        %1475 = vmatprep.subr.bf16.mxu0 0
        %1476 = vmatpush2.bf16.msra.mxu0 0
        %1477 = vmatprep.subr.bf16.mxu0 0
        %1478 = vmatpush2.bf16.msra.mxu0 0
        %1479 = vmatprep.subr.bf16.mxu0 0
        %1480 = vmatpush2.bf16.msra.mxu0 0
        %1481 = vmatprep.subr.bf16.mxu0 0
        %1482 = vmatpush2.bf16.msra.mxu0 0
        %1483 = vmatprep.subr.bf16.mxu0 0
        %1484 = vmatpush2.bf16.msra.mxu0 0
        %1485 = vmatprep.subr.bf16.mxu0 0
        %1486 = vmatpush2.bf16.msra.mxu0 0
        %1487 = vmatprep.mubr.bf16.mxu0 0
        %1488 = vmatmul.mubr.bf16.gmra.mxu0 %v776
        %v1489 = vpop.f32.mrf.mxu0
        %v1490 = vadd.f32 0.0, %v1489
        %v1491 = vpop.f32.mrf.mxu0
        %v1492 = vpop.f32.mrf.mxu0
        %v1493 = vadd.f32 0.0, %v1492
        %v1494 = vpop.f32.mrf.mxu0
        %1495 = vmatprep.mubr.bf16.mxu0 0
        %1496 = vmatmul.mubr.bf16.gmra.mxu0 %v779
        %v1497 = vpop.f32.mrf.mxu0
        %v1498 = vadd.f32 0.0, %v1497
        %v1499 = vpop.f32.mrf.mxu0
        %v1500 = vpop.f32.mrf.mxu0
        %v1501 = vadd.f32 0.0, %v1500
        %v1502 = vpop.f32.mrf.mxu0
        %1503 = vmatprep.mubr.bf16.mxu0 0
        %1504 = vmatmul.mubr.bf16.gmra.mxu0 %v782
        %v1505 = vpop.f32.mrf.mxu0
        %v1506 = vadd.f32 0.0, %v1505
        %v1507 = vpop.f32.mrf.mxu0
        %v1508 = vpop.f32.mrf.mxu0
        %v1509 = vadd.f32 0.0, %v1508
        %v1510 = vpop.f32.mrf.mxu0
        %1511 = vmatprep.mubr.bf16.mxu0 0
        %1512 = vmatmul.mubr.bf16.gmra.mxu0 %v785
        %v1513 = vpop.f32.mrf.mxu0
        %v1514 = vadd.f32 0.0, %v1513
        %v1515 = vpop.f32.mrf.mxu0
        %v1516 = vpop.f32.mrf.mxu0
        %v1517 = vadd.f32 0.0, %v1516
        %v1518 = vpop.f32.mrf.mxu0
        %1519 = vmatprep.mubr.bf16.mxu0 0
        %1520 = vmatmul.mubr.bf16.gmra.mxu0 %v788
        %v1521 = vpop.f32.mrf.mxu0
        %v1522 = vadd.f32 0.0, %v1521
        %v1523 = vpop.f32.mrf.mxu0
        %v1524 = vpop.f32.mrf.mxu0
        %v1525 = vadd.f32 0.0, %v1524
        %v1526 = vpop.f32.mrf.mxu0
        %1527 = vmatprep.mubr.bf16.mxu0 0
        %1528 = vmatmul.mubr.bf16.gmra.mxu0 %v791
        %v1529 = vpop.f32.mrf.mxu0
        %v1530 = vadd.f32 0.0, %v1529
        %v1531 = vpop.f32.mrf.mxu0
        %v1532 = vpop.f32.mrf.mxu0
        %v1533 = vadd.f32 0.0, %v1532
        %v1534 = vpop.f32.mrf.mxu0
        %1535 = vmatprep.mubr.bf16.mxu0 0
        %1536 = vmatmul.mubr.bf16.gmra.mxu0 %v794
        %v1537 = vpop.f32.mrf.mxu0
        %v1538 = vadd.f32 0.0, %v1537
        %v1539 = vpop.f32.mrf.mxu0
        %v1540 = vpop.f32.mrf.mxu0
        %v1541 = vadd.f32 0.0, %v1540
        %v1542 = vpop.f32.mrf.mxu0
        %1543 = vmatprep.mubr.bf16.mxu0 0
        %1544 = vmatmul.mubr.bf16.gmra.mxu0 %v1450
        %v1545 = vpop.f32.mrf.mxu0
        %v1546 = vadd.f32 0.0, %v1545
        %v1547 = vpop.f32.mrf.mxu0
        %v1548 = vpop.f32.mrf.mxu0
        %v1549 = vadd.f32 0.0, %v1548
        %v1550 = vpop.f32.mrf.mxu0
        %1551 = vdwg.mxu0
        %v1552 = vadd.f32 %v1404, %v1490
        %v1553 = vadd.f32 %v1405, %v1493
        %v1554 = vadd.f32 %v1406, %v1498
        %v1555 = vadd.f32 %v1407, %v1501
        %v1556 = vadd.f32 %v1408, %v1506
        %v1557 = vadd.f32 %v1409, %v1509
        %v1558 = vadd.f32 %v1410, %v1514
        %v1559 = vadd.f32 %v1411, %v1517
        %v1560 = vadd.f32 %v1412, %v1522
        %v1561 = vadd.f32 %v1413, %v1525
        %v1562 = vadd.f32 %v1414, %v1530
        %v1563 = vadd.f32 %v1415, %v1533
        %v1564 = vadd.f32 %v1416, %v1538
        %v1565 = vadd.f32 %v1417, %v1541
        %v1566 = vadd.f32 %v1418, %v1546
        %v1567 = vadd.f32 %v1419, %v1549
        %v1569 = vrot.slane %v543, 5
        %v1570 = vrot.slane %v1569, 4
        %v1571 = vrot.slane %v544, 5
        %v1572 = vsel %vm1071, %v1570, %v1571
        %v1573 = vrot.slane %v1571, 4
        %v1574 = vrot.slane %v545, 5
        %v1575 = vsel %vm1071, %v1573, %v1574
        %s1576 = scalar_lea.vmem [#allocation2], 10
        %v1577 = vld [vmem:[%s1576] sm:$0x3]
        %v1578 = vunpack.c.l.b16 %v1572
        %v1579 = vunpack.c.l.b16 %v1575
        %v1580 = vpack.c.b16 %v1579, %v1578
        %v1582 = vsel %vm771, %v1580, 0
        %v1585 = vsel %vm796, %v1577, 0
        %1587 = vmatprep.subr.bf16.mxu0 0
        %1588 = vmatpush1.bf16.msra.mxu0 0
        %1589 = vmatprep.subr.bf16.mxu0 0
        %1590 = vmatpush1.bf16.msra.mxu0 0
        %1591 = vmatprep.subr.bf16.mxu0 0
        %1592 = vmatpush1.bf16.msra.mxu0 0
        %1593 = vmatprep.subr.bf16.mxu0 0
        %1594 = vmatpush1.bf16.msra.mxu0 0
        %1595 = vmatprep.subr.bf16.mxu0 0
        %1596 = vmatpush1.bf16.msra.mxu0 0
        %1597 = vmatprep.subr.bf16.mxu0 0
        %1598 = vmatpush1.bf16.msra.mxu0 0
        %1599 = vmatprep.subr.bf16.mxu0 0
        %1600 = vmatpush1.bf16.msra.mxu0 0
        %1601 = vmatprep.subr.bf16.mxu0 0
        %1602 = vmatpush1.bf16.msra.mxu0 %v1585
        %1603 = vmatprep.subr.bf16.mxu0 0
        %1604 = vmatpush2.bf16.msra.mxu0 0
        %1605 = vmatprep.subr.bf16.mxu0 0
        %1606 = vmatpush2.bf16.msra.mxu0 0
        %1607 = vmatprep.subr.bf16.mxu0 0
        %1608 = vmatpush2.bf16.msra.mxu0 0
        %1609 = vmatprep.subr.bf16.mxu0 0
        %1610 = vmatpush2.bf16.msra.mxu0 0
        %1611 = vmatprep.subr.bf16.mxu0 0
        %1612 = vmatpush2.bf16.msra.mxu0 0
        %1613 = vmatprep.subr.bf16.mxu0 0
        %1614 = vmatpush2.bf16.msra.mxu0 0
        %1615 = vmatprep.subr.bf16.mxu0 0
        %1616 = vmatpush2.bf16.msra.mxu0 0
        %1617 = vmatprep.subr.bf16.mxu0 0
        %1618 = vmatpush2.bf16.msra.mxu0 0
        %1619 = vmatprep.mubr.bf16.mxu0 0
        %1620 = vmatmul.mubr.bf16.gmra.mxu0 %v1158
        %v1621 = vpop.f32.mrf.mxu0
        %v1622 = vadd.f32 0.0, %v1621
        %v1623 = vpop.f32.mrf.mxu0
        %v1624 = vpop.f32.mrf.mxu0
        %v1625 = vadd.f32 0.0, %v1624
        %v1626 = vpop.f32.mrf.mxu0
        %1627 = vmatprep.mubr.bf16.mxu0 0
        %1628 = vmatmul.mubr.bf16.gmra.mxu0 %v1161
        %v1629 = vpop.f32.mrf.mxu0
        %v1630 = vadd.f32 0.0, %v1629
        %v1631 = vpop.f32.mrf.mxu0
        %v1632 = vpop.f32.mrf.mxu0
        %v1633 = vadd.f32 0.0, %v1632
        %v1634 = vpop.f32.mrf.mxu0
        %1635 = vmatprep.mubr.bf16.mxu0 0
        %1636 = vmatmul.mubr.bf16.gmra.mxu0 %v1164
        %v1637 = vpop.f32.mrf.mxu0
        %v1638 = vadd.f32 0.0, %v1637
        %v1639 = vpop.f32.mrf.mxu0
        %v1640 = vpop.f32.mrf.mxu0
        %v1641 = vadd.f32 0.0, %v1640
        %v1642 = vpop.f32.mrf.mxu0
        %1643 = vmatprep.mubr.bf16.mxu0 0
        %1644 = vmatmul.mubr.bf16.gmra.mxu0 %v1167
        %v1645 = vpop.f32.mrf.mxu0
        %v1646 = vadd.f32 0.0, %v1645
        %v1647 = vpop.f32.mrf.mxu0
        %v1648 = vpop.f32.mrf.mxu0
        %v1649 = vadd.f32 0.0, %v1648
        %v1650 = vpop.f32.mrf.mxu0
        %1651 = vmatprep.mubr.bf16.mxu0 0
        %1652 = vmatmul.mubr.bf16.gmra.mxu0 %v1170
        %v1653 = vpop.f32.mrf.mxu0
        %v1654 = vadd.f32 0.0, %v1653
        %v1655 = vpop.f32.mrf.mxu0
        %v1656 = vpop.f32.mrf.mxu0
        %v1657 = vadd.f32 0.0, %v1656
        %v1658 = vpop.f32.mrf.mxu0
        %1659 = vmatprep.mubr.bf16.mxu0 0
        %1660 = vmatmul.mubr.bf16.gmra.mxu0 %v1173
        %v1661 = vpop.f32.mrf.mxu0
        %v1662 = vadd.f32 0.0, %v1661
        %v1663 = vpop.f32.mrf.mxu0
        %v1664 = vpop.f32.mrf.mxu0
        %v1665 = vadd.f32 0.0, %v1664
        %v1666 = vpop.f32.mrf.mxu0
        %1667 = vmatprep.mubr.bf16.mxu0 0
        %1668 = vmatmul.mubr.bf16.gmra.mxu0 %v1176
        %v1669 = vpop.f32.mrf.mxu0
        %v1670 = vadd.f32 0.0, %v1669
        %v1671 = vpop.f32.mrf.mxu0
        %v1672 = vpop.f32.mrf.mxu0
        %v1673 = vadd.f32 0.0, %v1672
        %v1674 = vpop.f32.mrf.mxu0
        %1675 = vmatprep.mubr.bf16.mxu0 0
        %1676 = vmatmul.mubr.bf16.gmra.mxu0 %v1582
        %v1677 = vpop.f32.mrf.mxu0
        %v1678 = vadd.f32 0.0, %v1677
        %v1679 = vpop.f32.mrf.mxu0
        %v1680 = vpop.f32.mrf.mxu0
        %v1681 = vadd.f32 0.0, %v1680
        %v1682 = vpop.f32.mrf.mxu0
        %1683 = vdwg.mxu0
        %v1684 = vadd.f32 %v1552, %v1622
        %v1685 = vadd.f32 %v1553, %v1625
        %v1686 = vadd.f32 %v1554, %v1630
        %v1687 = vadd.f32 %v1555, %v1633
        %v1688 = vadd.f32 %v1556, %v1638
        %v1689 = vadd.f32 %v1557, %v1641
        %v1690 = vadd.f32 %v1558, %v1646
        %v1691 = vadd.f32 %v1559, %v1649
        %v1692 = vadd.f32 %v1560, %v1654
        %v1693 = vadd.f32 %v1561, %v1657
        %v1694 = vadd.f32 %v1562, %v1662
        %v1695 = vadd.f32 %v1563, %v1665
        %v1696 = vadd.f32 %v1564, %v1670
        %v1697 = vadd.f32 %v1565, %v1673
        %v1698 = vadd.f32 %v1566, %v1678
        %v1699 = vadd.f32 %v1567, %v1681
        %s1700 = scalar_lea.vmem [#allocation2], 12
        %v1701 = vld [vmem:[%s1700] sm:$0x3]
        %v1704 = vunpack.c.l.b16 %v546
        %v1705 = vunpack.c.l.b16 %v547
        %v1706 = vpack.c.b16 %v1705, %v1704
        %v1708 = vsel %vm771, %v1706, 0
        %v1711 = vsel %vm796, %v1701, 0
        %1713 = vmatprep.subr.bf16.mxu0 0
        %1714 = vmatpush1.bf16.msra.mxu0 0
        %1715 = vmatprep.subr.bf16.mxu0 0
        %1716 = vmatpush1.bf16.msra.mxu0 0
        %1717 = vmatprep.subr.bf16.mxu0 0
        %1718 = vmatpush1.bf16.msra.mxu0 0
        %1719 = vmatprep.subr.bf16.mxu0 0
        %1720 = vmatpush1.bf16.msra.mxu0 0
        %1721 = vmatprep.subr.bf16.mxu0 0
        %1722 = vmatpush1.bf16.msra.mxu0 0
        %1723 = vmatprep.subr.bf16.mxu0 0
        %1724 = vmatpush1.bf16.msra.mxu0 0
        %1725 = vmatprep.subr.bf16.mxu0 0
        %1726 = vmatpush1.bf16.msra.mxu0 0
        %1727 = vmatprep.subr.bf16.mxu0 0
        %1728 = vmatpush1.bf16.msra.mxu0 %v1711
        %1729 = vmatprep.subr.bf16.mxu0 0
        %1730 = vmatpush2.bf16.msra.mxu0 0
        %1731 = vmatprep.subr.bf16.mxu0 0
        %1732 = vmatpush2.bf16.msra.mxu0 0
        %1733 = vmatprep.subr.bf16.mxu0 0
        %1734 = vmatpush2.bf16.msra.mxu0 0
        %1735 = vmatprep.subr.bf16.mxu0 0
        %1736 = vmatpush2.bf16.msra.mxu0 0
        %1737 = vmatprep.subr.bf16.mxu0 0
        %1738 = vmatpush2.bf16.msra.mxu0 0
        %1739 = vmatprep.subr.bf16.mxu0 0
        %1740 = vmatpush2.bf16.msra.mxu0 0
        %1741 = vmatprep.subr.bf16.mxu0 0
        %1742 = vmatpush2.bf16.msra.mxu0 0
        %1743 = vmatprep.subr.bf16.mxu0 0
        %1744 = vmatpush2.bf16.msra.mxu0 0
        %1745 = vmatprep.mubr.bf16.mxu0 0
        %1746 = vmatmul.mubr.bf16.gmra.mxu0 %v944
        %v1747 = vpop.f32.mrf.mxu0
        %v1748 = vadd.f32 0.0, %v1747
        %v1749 = vpop.f32.mrf.mxu0
        %v1750 = vpop.f32.mrf.mxu0
        %v1751 = vadd.f32 0.0, %v1750
        %v1752 = vpop.f32.mrf.mxu0
        %1753 = vmatprep.mubr.bf16.mxu0 0
        %1754 = vmatmul.mubr.bf16.gmra.mxu0 %v947
        %v1755 = vpop.f32.mrf.mxu0
        %v1756 = vadd.f32 0.0, %v1755
        %v1757 = vpop.f32.mrf.mxu0
        %v1758 = vpop.f32.mrf.mxu0
        %v1759 = vadd.f32 0.0, %v1758
        %v1760 = vpop.f32.mrf.mxu0
        %1761 = vmatprep.mubr.bf16.mxu0 0
        %1762 = vmatmul.mubr.bf16.gmra.mxu0 %v950
        %v1763 = vpop.f32.mrf.mxu0
        %v1764 = vadd.f32 0.0, %v1763
        %v1765 = vpop.f32.mrf.mxu0
        %v1766 = vpop.f32.mrf.mxu0
        %v1767 = vadd.f32 0.0, %v1766
        %v1768 = vpop.f32.mrf.mxu0
        %1769 = vmatprep.mubr.bf16.mxu0 0
        %1770 = vmatmul.mubr.bf16.gmra.mxu0 %v953
        %v1771 = vpop.f32.mrf.mxu0
        %v1772 = vadd.f32 0.0, %v1771
        %v1773 = vpop.f32.mrf.mxu0
        %v1774 = vpop.f32.mrf.mxu0
        %v1775 = vadd.f32 0.0, %v1774
        %v1776 = vpop.f32.mrf.mxu0
        %1777 = vmatprep.mubr.bf16.mxu0 0
        %1778 = vmatmul.mubr.bf16.gmra.mxu0 %v956
        %v1779 = vpop.f32.mrf.mxu0
        %v1780 = vadd.f32 0.0, %v1779
        %v1781 = vpop.f32.mrf.mxu0
        %v1782 = vpop.f32.mrf.mxu0
        %v1783 = vadd.f32 0.0, %v1782
        %v1784 = vpop.f32.mrf.mxu0
        %1785 = vmatprep.mubr.bf16.mxu0 0
        %1786 = vmatmul.mubr.bf16.gmra.mxu0 %v959
        %v1787 = vpop.f32.mrf.mxu0
        %v1788 = vadd.f32 0.0, %v1787
        %v1789 = vpop.f32.mrf.mxu0
        %v1790 = vpop.f32.mrf.mxu0
        %v1791 = vadd.f32 0.0, %v1790
        %v1792 = vpop.f32.mrf.mxu0
        %1793 = vmatprep.mubr.bf16.mxu0 0
        %1794 = vmatmul.mubr.bf16.gmra.mxu0 %v1302
        %v1795 = vpop.f32.mrf.mxu0
        %v1796 = vadd.f32 0.0, %v1795
        %v1797 = vpop.f32.mrf.mxu0
        %v1798 = vpop.f32.mrf.mxu0
        %v1799 = vadd.f32 0.0, %v1798
        %v1800 = vpop.f32.mrf.mxu0
        %1801 = vmatprep.mubr.bf16.mxu0 0
        %1802 = vmatmul.mubr.bf16.gmra.mxu0 %v1708
        %v1803 = vpop.f32.mrf.mxu0
        %v1804 = vadd.f32 0.0, %v1803
        %v1805 = vpop.f32.mrf.mxu0
        %v1806 = vpop.f32.mrf.mxu0
        %v1807 = vadd.f32 0.0, %v1806
        %v1808 = vpop.f32.mrf.mxu0
        %1809 = vdwg.mxu0
        %v1810 = vadd.f32 %v1684, %v1748
        %v1811 = vadd.f32 %v1685, %v1751
        %v1812 = vadd.f32 %v1686, %v1756
        %v1813 = vadd.f32 %v1687, %v1759
        %v1814 = vadd.f32 %v1688, %v1764
        %v1815 = vadd.f32 %v1689, %v1767
        %v1816 = vadd.f32 %v1690, %v1772
        %v1817 = vadd.f32 %v1691, %v1775
        %v1818 = vadd.f32 %v1692, %v1780
        %v1819 = vadd.f32 %v1693, %v1783
        %v1820 = vadd.f32 %v1694, %v1788
        %v1821 = vadd.f32 %v1695, %v1791
        %v1822 = vadd.f32 %v1696, %v1796
        %v1823 = vadd.f32 %v1697, %v1799
        %v1824 = vadd.f32 %v1698, %v1804
        %v1825 = vadd.f32 %v1699, %v1807
        %v1827 = vshrl.u32 %v546, 16
        %v1829 = vrot.slane %v1827, 4
        %v1830 = vshll.u32 %v546, 16
        %v1832 = vrot.slane %v1830, 5
        %v1833 = vor.u32 %v1829, %v1832
        %v1834 = vrot.slane %v1833, 4
        %v1836 = vshll.u32 %v547, 16
        %v1838 = vrot.slane %v1836, 5
        %v1839 = vsel %vm552, %v1834, %v1838
        %v1840 = vshrl.u32 %v547, 16
        %v1842 = vrot.slane %v1840, 4
        %v1843 = vor.u32 %v1842, %v1838
        %v1844 = vrot.slane %v1843, 4
        %v1846 = vshll.u32 %v548, 16
        %v1848 = vrot.slane %v1846, 5
        %v1849 = vsel %vm552, %v1844, %v1848
        %s1850 = scalar_lea.vmem [#allocation2], 14
        %v1851 = vld [vmem:[%s1850] sm:$0x3]
        %v1852 = vunpack.c.l.b16 %v1839
        %v1853 = vunpack.c.l.b16 %v1849
        %v1854 = vpack.c.b16 %v1853, %v1852
        %v1856 = vsel %vm771, %v1854, 0
        %v1859 = vsel %vm796, %v1851, 0
        %1861 = vmatprep.subr.bf16.mxu0 0
        %1862 = vmatpush1.bf16.msra.mxu0 0
        %1863 = vmatprep.subr.bf16.mxu0 0
        %1864 = vmatpush1.bf16.msra.mxu0 0
        %1865 = vmatprep.subr.bf16.mxu0 0
        %1866 = vmatpush1.bf16.msra.mxu0 0
        %1867 = vmatprep.subr.bf16.mxu0 0
        %1868 = vmatpush1.bf16.msra.mxu0 0
        %1869 = vmatprep.subr.bf16.mxu0 0
        %1870 = vmatpush1.bf16.msra.mxu0 0
        %1871 = vmatprep.subr.bf16.mxu0 0
        %1872 = vmatpush1.bf16.msra.mxu0 0
        %1873 = vmatprep.subr.bf16.mxu0 0
        %1874 = vmatpush1.bf16.msra.mxu0 0
        %1875 = vmatprep.subr.bf16.mxu0 0
        %1876 = vmatpush1.bf16.msra.mxu0 %v1859
        %1877 = vmatprep.subr.bf16.mxu0 0
        %1878 = vmatpush2.bf16.msra.mxu0 0
        %1879 = vmatprep.subr.bf16.mxu0 0
        %1880 = vmatpush2.bf16.msra.mxu0 0
        %1881 = vmatprep.subr.bf16.mxu0 0
        %1882 = vmatpush2.bf16.msra.mxu0 0
        %1883 = vmatprep.subr.bf16.mxu0 0
        %1884 = vmatpush2.bf16.msra.mxu0 0
        %1885 = vmatprep.subr.bf16.mxu0 0
        %1886 = vmatpush2.bf16.msra.mxu0 0
        %1887 = vmatprep.subr.bf16.mxu0 0
        %1888 = vmatpush2.bf16.msra.mxu0 0
        %1889 = vmatprep.subr.bf16.mxu0 0
        %1890 = vmatpush2.bf16.msra.mxu0 0
        %1891 = vmatprep.subr.bf16.mxu0 0
        %1892 = vmatpush2.bf16.msra.mxu0 0
        %1893 = vmatprep.mubr.bf16.mxu0 0
        %1894 = vmatmul.mubr.bf16.gmra.mxu0 %v779
        %v1895 = vpop.f32.mrf.mxu0
        %v1896 = vadd.f32 0.0, %v1895
        %v1897 = vpop.f32.mrf.mxu0
        %v1898 = vpop.f32.mrf.mxu0
        %v1899 = vadd.f32 0.0, %v1898
        %v1900 = vpop.f32.mrf.mxu0
        %1901 = vmatprep.mubr.bf16.mxu0 0
        %1902 = vmatmul.mubr.bf16.gmra.mxu0 %v782
        %v1903 = vpop.f32.mrf.mxu0
        %v1904 = vadd.f32 0.0, %v1903
        %v1905 = vpop.f32.mrf.mxu0
        %v1906 = vpop.f32.mrf.mxu0
        %v1907 = vadd.f32 0.0, %v1906
        %v1908 = vpop.f32.mrf.mxu0
        %1909 = vmatprep.mubr.bf16.mxu0 0
        %1910 = vmatmul.mubr.bf16.gmra.mxu0 %v785
        %v1911 = vpop.f32.mrf.mxu0
        %v1912 = vadd.f32 0.0, %v1911
        %v1913 = vpop.f32.mrf.mxu0
        %v1914 = vpop.f32.mrf.mxu0
        %v1915 = vadd.f32 0.0, %v1914
        %v1916 = vpop.f32.mrf.mxu0
        %1917 = vmatprep.mubr.bf16.mxu0 0
        %1918 = vmatmul.mubr.bf16.gmra.mxu0 %v788
        %v1919 = vpop.f32.mrf.mxu0
        %v1920 = vadd.f32 0.0, %v1919
        %v1921 = vpop.f32.mrf.mxu0
        %v1922 = vpop.f32.mrf.mxu0
        %v1923 = vadd.f32 0.0, %v1922
        %v1924 = vpop.f32.mrf.mxu0
        %1925 = vmatprep.mubr.bf16.mxu0 0
        %1926 = vmatmul.mubr.bf16.gmra.mxu0 %v791
        %v1927 = vpop.f32.mrf.mxu0
        %v1928 = vadd.f32 0.0, %v1927
        %v1929 = vpop.f32.mrf.mxu0
        %v1930 = vpop.f32.mrf.mxu0
        %v1931 = vadd.f32 0.0, %v1930
        %v1932 = vpop.f32.mrf.mxu0
        %1933 = vmatprep.mubr.bf16.mxu0 0
        %1934 = vmatmul.mubr.bf16.gmra.mxu0 %v794
        %v1935 = vpop.f32.mrf.mxu0
        %v1936 = vadd.f32 0.0, %v1935
        %v1937 = vpop.f32.mrf.mxu0
        %v1938 = vpop.f32.mrf.mxu0
        %v1939 = vadd.f32 0.0, %v1938
        %v1940 = vpop.f32.mrf.mxu0
        %1941 = vmatprep.mubr.bf16.mxu0 0
        %1942 = vmatmul.mubr.bf16.gmra.mxu0 %v1450
        %v1943 = vpop.f32.mrf.mxu0
        %v1944 = vadd.f32 0.0, %v1943
        %v1945 = vpop.f32.mrf.mxu0
        %v1946 = vpop.f32.mrf.mxu0
        %v1947 = vadd.f32 0.0, %v1946
        %v1948 = vpop.f32.mrf.mxu0
        %1949 = vmatprep.mubr.bf16.mxu0 0
        %1950 = vmatmul.mubr.bf16.gmra.mxu0 %v1856
        %v1951 = vpop.f32.mrf.mxu0
        %v1952 = vadd.f32 0.0, %v1951
        %v1953 = vpop.f32.mrf.mxu0
        %v1954 = vpop.f32.mrf.mxu0
        %v1955 = vadd.f32 0.0, %v1954
        %v1956 = vpop.f32.mrf.mxu0
        %1957 = vdwg.mxu0
        %v1958 = vadd.f32 %v1810, %v1896
        %v1959 = vadd.f32 %v1811, %v1899
        %v1960 = vadd.f32 %v1812, %v1904
        %v1961 = vadd.f32 %v1813, %v1907
        %v1962 = vadd.f32 %v1814, %v1912
        %v1963 = vadd.f32 %v1815, %v1915
        %v1964 = vadd.f32 %v1816, %v1920
        %v1965 = vadd.f32 %v1817, %v1923
        %v1966 = vadd.f32 %v1818, %v1928
        %v1967 = vadd.f32 %v1819, %v1931
        %v1968 = vadd.f32 %v1820, %v1936
        %v1969 = vadd.f32 %v1821, %v1939
        %v1970 = vadd.f32 %v1822, %v1944
        %v1971 = vadd.f32 %v1823, %v1947
        %v1972 = vadd.f32 %v1824, %v1952
        %v1973 = vadd.f32 %v1825, %v1955
        %v1975 = vrot.slane %v546, 5
        %v1976 = vrot.slane %v1975, 4
        %v1977 = vrot.slane %v547, 5
        %v1978 = vsel %vm1071, %v1976, %v1977
        %v1979 = vrot.slane %v1977, 4
        %v1980 = vrot.slane %v548, 5
        %v1981 = vsel %vm1071, %v1979, %v1980
        %s1982 = scalar_lea.vmem [#allocation2], 16
        %v1983 = vld [vmem:[%s1982] sm:$0x3]
        %v1984 = vunpack.c.l.b16 %v1978
        %v1985 = vunpack.c.l.b16 %v1981
        %v1986 = vpack.c.b16 %v1985, %v1984
        %v1988 = vsel %vm771, %v1986, 0
        %v1991 = vsel %vm796, %v1983, 0
        %1993 = vmatprep.subr.bf16.mxu0 0
        %1994 = vmatpush1.bf16.msra.mxu0 0
        %1995 = vmatprep.subr.bf16.mxu0 0
        %1996 = vmatpush1.bf16.msra.mxu0 0
        %1997 = vmatprep.subr.bf16.mxu0 0
        %1998 = vmatpush1.bf16.msra.mxu0 0
        %1999 = vmatprep.subr.bf16.mxu0 0
        %2000 = vmatpush1.bf16.msra.mxu0 0
        %2001 = vmatprep.subr.bf16.mxu0 0
        %2002 = vmatpush1.bf16.msra.mxu0 0
        %2003 = vmatprep.subr.bf16.mxu0 0
        %2004 = vmatpush1.bf16.msra.mxu0 0
        %2005 = vmatprep.subr.bf16.mxu0 0
        %2006 = vmatpush1.bf16.msra.mxu0 0
        %2007 = vmatprep.subr.bf16.mxu0 0
        %2008 = vmatpush1.bf16.msra.mxu0 %v1991
        %2009 = vmatprep.subr.bf16.mxu0 0
        %2010 = vmatpush2.bf16.msra.mxu0 0
        %2011 = vmatprep.subr.bf16.mxu0 0
        %2012 = vmatpush2.bf16.msra.mxu0 0
        %2013 = vmatprep.subr.bf16.mxu0 0
        %2014 = vmatpush2.bf16.msra.mxu0 0
        %2015 = vmatprep.subr.bf16.mxu0 0
        %2016 = vmatpush2.bf16.msra.mxu0 0
        %2017 = vmatprep.subr.bf16.mxu0 0
        %2018 = vmatpush2.bf16.msra.mxu0 0
        %2019 = vmatprep.subr.bf16.mxu0 0
        %2020 = vmatpush2.bf16.msra.mxu0 0
        %2021 = vmatprep.subr.bf16.mxu0 0
        %2022 = vmatpush2.bf16.msra.mxu0 0
        %2023 = vmatprep.subr.bf16.mxu0 0
        %2024 = vmatpush2.bf16.msra.mxu0 0
        %2025 = vmatprep.mubr.bf16.mxu0 0
        %2026 = vmatmul.mubr.bf16.gmra.mxu0 %v1161
        %v2027 = vpop.f32.mrf.mxu0
        %v2028 = vadd.f32 0.0, %v2027
        %v2029 = vpop.f32.mrf.mxu0
        %v2030 = vpop.f32.mrf.mxu0
        %v2031 = vadd.f32 0.0, %v2030
        %v2032 = vpop.f32.mrf.mxu0
        %2033 = vmatprep.mubr.bf16.mxu0 0
        %2034 = vmatmul.mubr.bf16.gmra.mxu0 %v1164
        %v2035 = vpop.f32.mrf.mxu0
        %v2036 = vadd.f32 0.0, %v2035
        %v2037 = vpop.f32.mrf.mxu0
        %v2038 = vpop.f32.mrf.mxu0
        %v2039 = vadd.f32 0.0, %v2038
        %v2040 = vpop.f32.mrf.mxu0
        %2041 = vmatprep.mubr.bf16.mxu0 0
        %2042 = vmatmul.mubr.bf16.gmra.mxu0 %v1167
        %v2043 = vpop.f32.mrf.mxu0
        %v2044 = vadd.f32 0.0, %v2043
        %v2045 = vpop.f32.mrf.mxu0
        %v2046 = vpop.f32.mrf.mxu0
        %v2047 = vadd.f32 0.0, %v2046
        %v2048 = vpop.f32.mrf.mxu0
        %2049 = vmatprep.mubr.bf16.mxu0 0
        %2050 = vmatmul.mubr.bf16.gmra.mxu0 %v1170
        %v2051 = vpop.f32.mrf.mxu0
        %v2052 = vadd.f32 0.0, %v2051
        %v2053 = vpop.f32.mrf.mxu0
        %v2054 = vpop.f32.mrf.mxu0
        %v2055 = vadd.f32 0.0, %v2054
        %v2056 = vpop.f32.mrf.mxu0
        %2057 = vmatprep.mubr.bf16.mxu0 0
        %2058 = vmatmul.mubr.bf16.gmra.mxu0 %v1173
        %v2059 = vpop.f32.mrf.mxu0
        %v2060 = vadd.f32 0.0, %v2059
        %v2061 = vpop.f32.mrf.mxu0
        %v2062 = vpop.f32.mrf.mxu0
        %v2063 = vadd.f32 0.0, %v2062
        %v2064 = vpop.f32.mrf.mxu0
        %2065 = vmatprep.mubr.bf16.mxu0 0
        %2066 = vmatmul.mubr.bf16.gmra.mxu0 %v1176
        %v2067 = vpop.f32.mrf.mxu0
        %v2068 = vadd.f32 0.0, %v2067
        %v2069 = vpop.f32.mrf.mxu0
        %v2070 = vpop.f32.mrf.mxu0
        %v2071 = vadd.f32 0.0, %v2070
        %v2072 = vpop.f32.mrf.mxu0
        %2073 = vmatprep.mubr.bf16.mxu0 0
        %2074 = vmatmul.mubr.bf16.gmra.mxu0 %v1582
        %v2075 = vpop.f32.mrf.mxu0
        %v2076 = vadd.f32 0.0, %v2075
        %v2077 = vpop.f32.mrf.mxu0
        %v2078 = vpop.f32.mrf.mxu0
        %v2079 = vadd.f32 0.0, %v2078
        %v2080 = vpop.f32.mrf.mxu0
        %2081 = vmatprep.mubr.bf16.mxu0 0
        %2082 = vmatmul.mubr.bf16.gmra.mxu0 %v1988
        %v2083 = vpop.f32.mrf.mxu0
        %v2084 = vadd.f32 0.0, %v2083
        %v2085 = vpop.f32.mrf.mxu0
        %v2086 = vpop.f32.mrf.mxu0
        %v2087 = vadd.f32 0.0, %v2086
        %v2088 = vpop.f32.mrf.mxu0
        %2089 = vdwg.mxu0
        %v2090 = vadd.f32 %v1958, %v2028
        %v2091 = vadd.f32 %v1959, %v2031
        %v2092 = vadd.f32 %v1960, %v2036
        %v2093 = vadd.f32 %v1961, %v2039
        %v2094 = vadd.f32 %v1962, %v2044
        %v2095 = vadd.f32 %v1963, %v2047
        %v2096 = vadd.f32 %v1964, %v2052
        %v2097 = vadd.f32 %v1965, %v2055
        %v2098 = vadd.f32 %v1966, %v2060
        %v2099 = vadd.f32 %v1967, %v2063
        %v2100 = vadd.f32 %v1968, %v2068
        %v2101 = vadd.f32 %v1969, %v2071
        %v2102 = vadd.f32 %v1970, %v2076
        %v2103 = vadd.f32 %v1971, %v2079
        %v2104 = vadd.f32 %v1972, %v2084
        %v2105 = vadd.f32 %v1973, %v2087
        %v2106 = vld [vmem:[%s345] sm:$0xff]
        %v2107 = vld [vmem:[%s345 + $0x8] sm:$0xff]
        %v2108 = vld [vmem:[%s345 + $0x10] sm:$0xff]
        %v2109 = vld [vmem:[%s345 + $0x18] sm:$0xff]
        %v2110 = vld [vmem:[%s345 + $0x20] sm:$0xff]
        %v2111 = vld [vmem:[%s345 + $0x28] sm:$0xff]
        %v2112 = vld [vmem:[%s345 + $0x30] sm:$0xff]
        %v2113 = vld [vmem:[%s345 + $0x38] sm:$0xff]
        %v2114 = vld [vmem:[%s345 + $0x40] sm:$0xff]
        %v2115 = vld [vmem:[%s345 + $0x48] sm:$0xff]
        %v2116 = vld [vmem:[%s345 + $0x50] sm:$0xff]
        %v2117 = vld [vmem:[%s345 + $0x58] sm:$0xff]
        %v2118 = vld [vmem:[%s345 + $0x60] sm:$0xff]
        %v2119 = vld [vmem:[%s345 + $0x68] sm:$0xff]
        %v2120 = vld [vmem:[%s345 + $0x70] sm:$0xff]
        %v2121 = vld [vmem:[%s345 + $0x78] sm:$0xff]
        %2123 = vset.pattern.permute.xlu0 0
        %2124 = vperm.xlu0 %2123, %v2106
        %v2125 = vpop.permute.xlu0 %2124
        %2128 = vset.pattern.permute.xlu0 0
        %2129 = vperm.xlu0 %2128, %v2107
        %v2130 = vpop.permute.xlu0 %2129
        %2133 = vset.pattern.permute.xlu0 0
        %2134 = vperm.xlu0 %2133, %v2108
        %v2135 = vpop.permute.xlu0 %2134
        %2138 = vset.pattern.permute.xlu0 0
        %2139 = vperm.xlu0 %2138, %v2109
        %v2140 = vpop.permute.xlu0 %2139
        %2143 = vset.pattern.permute.xlu0 0
        %2144 = vperm.xlu0 %2143, %v2110
        %v2145 = vpop.permute.xlu0 %2144
        %2148 = vset.pattern.permute.xlu0 0
        %2149 = vperm.xlu0 %2148, %v2111
        %v2150 = vpop.permute.xlu0 %2149
        %2153 = vset.pattern.permute.xlu0 0
        %2154 = vperm.xlu0 %2153, %v2112
        %v2155 = vpop.permute.xlu0 %2154
        %2158 = vset.pattern.permute.xlu0 0
        %2159 = vperm.xlu0 %2158, %v2113
        %v2160 = vpop.permute.xlu0 %2159
        %2163 = vset.pattern.permute.xlu0 0
        %2164 = vperm.xlu0 %2163, %v2114
        %v2165 = vpop.permute.xlu0 %2164
        %2168 = vset.pattern.permute.xlu0 0
        %2169 = vperm.xlu0 %2168, %v2115
        %v2170 = vpop.permute.xlu0 %2169
        %2173 = vset.pattern.permute.xlu0 0
        %2174 = vperm.xlu0 %2173, %v2116
        %v2175 = vpop.permute.xlu0 %2174
        %2178 = vset.pattern.permute.xlu0 0
        %2179 = vperm.xlu0 %2178, %v2117
        %v2180 = vpop.permute.xlu0 %2179
        %2183 = vset.pattern.permute.xlu0 0
        %2184 = vperm.xlu0 %2183, %v2118
        %v2185 = vpop.permute.xlu0 %2184
        %2188 = vset.pattern.permute.xlu0 0
        %2189 = vperm.xlu0 %2188, %v2119
        %v2190 = vpop.permute.xlu0 %2189
        %2193 = vset.pattern.permute.xlu0 0
        %2194 = vperm.xlu0 %2193, %v2120
        %v2195 = vpop.permute.xlu0 %2194
        %2198 = vset.pattern.permute.xlu0 0
        %2199 = vperm.xlu0 %2198, %v2121
        %v2200 = vpop.permute.xlu0 %2199
        %v2202 = vadd.f32 %v2090, %v2125
        %v2203 = vadd.f32 %v2091, %v2130
        %v2204 = vadd.f32 %v2092, %v2135
        %v2205 = vadd.f32 %v2093, %v2140
        %v2206 = vadd.f32 %v2094, %v2145
        %v2207 = vadd.f32 %v2095, %v2150
        %v2208 = vadd.f32 %v2096, %v2155
        %v2209 = vadd.f32 %v2097, %v2160
        %v2210 = vadd.f32 %v2098, %v2165
        %v2211 = vadd.f32 %v2099, %v2170
        %v2212 = vadd.f32 %v2100, %v2175
        %v2213 = vadd.f32 %v2101, %v2180
        %v2214 = vadd.f32 %v2102, %v2185
        %v2215 = vadd.f32 %v2103, %v2190
        %v2216 = vadd.f32 %v2104, %v2195
        %v2217 = vadd.f32 %v2105, %v2200
        %v2218 = vld [vmem:[%s6] sm:$0x1]
        %v2220 = vlaneseq
        %v2221 = vshrl.u32 %v2220, 7
        %v2222 = vsub.s32 0, %v2221
        %v2223 = vrot.slane %v2218, %v2222
        %v2225 = vadd.f32 %v2202, %v2223
        %v2226 = vadd.f32 %v2203, %v2223
        %v2227 = vadd.f32 %v2204, %v2223
        %v2228 = vadd.f32 %v2205, %v2223
        %v2229 = vadd.f32 %v2206, %v2223
        %v2230 = vadd.f32 %v2207, %v2223
        %v2231 = vadd.f32 %v2208, %v2223
        %v2232 = vadd.f32 %v2209, %v2223
        %v2233 = vadd.f32 %v2210, %v2223
        %v2234 = vadd.f32 %v2211, %v2223
        %v2235 = vadd.f32 %v2212, %v2223
        %v2236 = vadd.f32 %v2213, %v2223
        %v2237 = vadd.f32 %v2214, %v2223
        %v2238 = vadd.f32 %v2215, %v2223
        %v2239 = vadd.f32 %v2216, %v2223
        %v2240 = vadd.f32 %v2217, %v2223
        %vm2241 = vcmp.ge.f32.partialorder %v2225, 0.0
        %vm2242 = vcmp.ge.f32.partialorder %v2226, 0.0
        %vm2243 = vcmp.ge.f32.partialorder %v2227, 0.0
        %vm2244 = vcmp.ge.f32.partialorder %v2228, 0.0
        %vm2245 = vcmp.ge.f32.partialorder %v2229, 0.0
        %vm2246 = vcmp.ge.f32.partialorder %v2230, 0.0
        %vm2247 = vcmp.ge.f32.partialorder %v2231, 0.0
        %vm2248 = vcmp.ge.f32.partialorder %v2232, 0.0
        %vm2249 = vcmp.ge.f32.partialorder %v2233, 0.0
        %vm2250 = vcmp.ge.f32.partialorder %v2234, 0.0
        %vm2251 = vcmp.ge.f32.partialorder %v2235, 0.0
        %vm2252 = vcmp.ge.f32.partialorder %v2236, 0.0
        %vm2253 = vcmp.ge.f32.partialorder %v2237, 0.0
        %vm2254 = vcmp.ge.f32.partialorder %v2238, 0.0
        %vm2255 = vcmp.ge.f32.partialorder %v2239, 0.0
        %vm2256 = vcmp.ge.f32.partialorder %v2240, 0.0
        %v2257 = vmul.f32 %v2225, 0.2
        %v2258 = vmul.f32 %v2226, 0.2
        %v2259 = vmul.f32 %v2227, 0.2
        %v2260 = vmul.f32 %v2228, 0.2
        %v2261 = vmul.f32 %v2229, 0.2
        %v2262 = vmul.f32 %v2230, 0.2
        %v2263 = vmul.f32 %v2231, 0.2
        %v2264 = vmul.f32 %v2232, 0.2
        %v2265 = vmul.f32 %v2233, 0.2
        %v2266 = vmul.f32 %v2234, 0.2
        %v2267 = vmul.f32 %v2235, 0.2
        %v2268 = vmul.f32 %v2236, 0.2
        %v2269 = vmul.f32 %v2237, 0.2
        %v2270 = vmul.f32 %v2238, 0.2
        %v2271 = vmul.f32 %v2239, 0.2
        %v2272 = vmul.f32 %v2240, 0.2
        %v2273 = vsel %vm2241, %v2225, %v2257
        %v2274 = vsel %vm2242, %v2226, %v2258
        %v2275 = vsel %vm2243, %v2227, %v2259
        %v2276 = vsel %vm2244, %v2228, %v2260
        %v2277 = vsel %vm2245, %v2229, %v2261
        %v2278 = vsel %vm2246, %v2230, %v2262
        %v2279 = vsel %vm2247, %v2231, %v2263
        %v2280 = vsel %vm2248, %v2232, %v2264
        %v2281 = vsel %vm2249, %v2233, %v2265
        %v2282 = vsel %vm2250, %v2234, %v2266
        %v2283 = vsel %vm2251, %v2235, %v2267
        %v2284 = vsel %vm2252, %v2236, %v2268
        %v2285 = vsel %vm2253, %v2237, %v2269
        %v2286 = vsel %vm2254, %v2238, %v2270
        %v2287 = vsel %vm2255, %v2239, %v2271
        %v2288 = vsel %vm2256, %v2240, %v2272
        %v2289 = vmul.f32 %v2273, 1.4142135
        %v2290 = vmul.f32 %v2274, 1.4142135
        %v2291 = vmul.f32 %v2275, 1.4142135
        %v2292 = vmul.f32 %v2276, 1.4142135
        %v2293 = vmul.f32 %v2277, 1.4142135
        %v2294 = vmul.f32 %v2278, 1.4142135
        %v2295 = vmul.f32 %v2279, 1.4142135
        %v2296 = vmul.f32 %v2280, 1.4142135
        %v2297 = vmul.f32 %v2281, 1.4142135
        %v2298 = vmul.f32 %v2282, 1.4142135
        %v2299 = vmul.f32 %v2283, 1.4142135
        %v2300 = vmul.f32 %v2284, 1.4142135
        %v2301 = vmul.f32 %v2285, 1.4142135
        %v2302 = vmul.f32 %v2286, 1.4142135
        %v2303 = vmul.f32 %v2287, 1.4142135
        %v2304 = vmul.f32 %v2288, 1.4142135
        %2305 = vst [vmem:[%s326] sm:$0xff] %v2289
        %2306 = vst [vmem:[%s326 + $0x8] sm:$0xff] %v2290
        %2307 = vst [vmem:[%s326 + $0x10] sm:$0xff] %v2291
        %2308 = vst [vmem:[%s326 + $0x18] sm:$0xff] %v2292
        %2309 = vst [vmem:[%s326 + $0x20] sm:$0xff] %v2293
        %2310 = vst [vmem:[%s326 + $0x28] sm:$0xff] %v2294
        %2311 = vst [vmem:[%s326 + $0x30] sm:$0xff] %v2295
        %2312 = vst [vmem:[%s326 + $0x38] sm:$0xff] %v2296
        %2313 = vst [vmem:[%s326 + $0x40] sm:$0xff] %v2297
        %2314 = vst [vmem:[%s326 + $0x48] sm:$0xff] %v2298
        %2315 = vst [vmem:[%s326 + $0x50] sm:$0xff] %v2299
        %2316 = vst [vmem:[%s326 + $0x58] sm:$0xff] %v2300
        %2317 = vst [vmem:[%s326 + $0x60] sm:$0xff] %v2301
        %2318 = vst [vmem:[%s326 + $0x68] sm:$0xff] %v2302
        %2319 = vst [vmem:[%s326 + $0x70] sm:$0xff] %v2303
        %2320 = vst [vmem:[%s326 + $0x78] sm:$0xff] %v2304
        %s2321 = sand.u32 %s209, 1
        %s2322 = scalar_lea.sflag [#allocation4], %s2321
        %s2323 = sand.u32 %s209, 1
        %s2324 = smul.addr %s2323, 128
        %s2325 = scalar_lea.vmem [#allocation3], %s2324
        // Predicated region
        $region53: #{tpu_custom_call.1} parent=47 // pred_check
          %p2326 = pneg %p219
        $region54: #{tpu_custom_call.1} parent=47 // pred_check_branch
          %2328 = sbr.rel (%p2326) target = $region56
        $region55: #{tpu_custom_call.1} parent=47 // pred_region
          %s2329 = smul.u32 16, %s26
          %s2331 = ssub.s32 2048, 2048
          %2332 = vsyncadd %s2322, %s2331
          %s2333 = smul.addr %s25, 32
          %s2334 = sadd.s32 %s2329, %s2333
          %s2335 = smul.addr %s2334, 128
          %s2336 = scalar_lea.hbm %s7, %s2335
          %s2337 = sshll.u32 %s2325, 4
          %s2338 = int_to_ptr.vmem [resolvable:$true] %s2337
          %2343 = dma.vmem_to_hbm [thread:$0]  %s2338, 2048, %s2336, %s2322, 128, 128, 8
        $region56: #{tpu_custom_call.1} parent=47 // pred_fallthru
          _
      $region48: #{tpu_custom_call.1} parent=5 // pred_fallthru
        _
      %p2344 = scmp.le.s32.totalorder 2, %s16
      // Predicated region
      $region57: #{tpu_custom_call.1} parent=5 // pred_check
        %p2345 = pneg %p2344
      $region58: #{tpu_custom_call.1} parent=5 // pred_check_branch
        %2347 = sbr.rel (%p2345) target = $region60
      $region59: #{tpu_custom_call.1} parent=5 // pred_region
        %s2348 = ssub.s32 %s16, 2
        // Predicated region
        $region61: #{tpu_custom_call.1} parent=59 // pred_check
          %p2349 = pneg %p225
        $region62: #{tpu_custom_call.1} parent=59 // pred_check_branch
          %2351 = sbr.rel (%p2349) target = $region64
        $region63: #{tpu_custom_call.1} parent=59 // pred_region
          %s2352 = sand.u32 %s210, 1
          %s2353 = scalar_lea.sflag [#allocation4], %s2352
          %s2354 = sand.u32 %s210, 1
          %s2355 = smul.addr %s2354, 128
          %s2356 = scalar_lea.vmem [#allocation3], %s2355
          %2357 = dma.done %s2353, 2048
        $region64: #{tpu_custom_call.1} parent=59 // pred_fallthru
          _
      $region60: #{tpu_custom_call.1} parent=5 // pred_fallthru
        _
    $region6: #{tpu_custom_call.1} parent=1 // loop_footer
      %s20 = sadd.s32 1, %s16
    $region7: #{tpu_custom_call.1} parent=1 // loop_footer_branch
      %15 = sbr.rel target = $region3
    $region8: #{tpu_custom_call.1} parent=1 // loop_exit
      _
    %2358 = vsyncpa [#allocation4], 1
    %s2359 = scalar_lea.sflag [#allocation4], 1
    %2360 = vsyncpa %s2359, 1

</llo_original>
